<compile_context>
chip_gen: v6e
topology: v6e:2x2x1
jax: 0.10.0
libtpu: 0.0.40
codegen_flags: <defaults>
</compile_context>

<pallas_src>
import functools

import numpy as np
import jax
import jax.numpy as jnp
from jax.experimental import pallas as pl
from jax.experimental.pallas import tpu as pltpu


# ----------------------------------------------------------------------------
# Fused multi-head self-attention kernel (whole batch in one invocation)
# ----------------------------------------------------------------------------
def mhsa_kernel(x_ref, wqkv_ref, bqkv_ref, wo_ref, bo_ref, o_ref, *,
                num_heads, head_dim, batch, seq):
    # x_ref:    (B, S, Din)                       f32
    # wqkv_ref: (Din, 3*H) packed [Wq*s | Wk | Wv] bf16   (H = nH*hd, s=1/sqrt(hd))
    # bqkv_ref: (1, 3*H)   packed [bq*s | bk | bv] f32
    # wo_ref:   (nH, hd, H) per-head split of Wo   bf16
    # bo_ref:   (1, H)                             f32
    # o_ref:    (B, S, H)                          f32
    B, S, nH, hd = batch, seq, num_heads, head_dim
    H = nH * hd
    N = B * S
    Din = x_ref.shape[-1]

    # ---- Fused QKV projection for ALL heads: one MXU matmul, bf16 operands,
    # f32 accumulation.  (The 1/sqrt(hd) scale is already folded into the Q
    # columns of wqkv / bqkv at packing time.)
    x = x_ref[...].reshape(N, Din).astype(jnp.bfloat16)
    qkv = jnp.dot(x, wqkv_ref[...], preferred_element_type=jnp.float32)
    qkv = qkv + bqkv_ref[...]                               # (N, 3H) f32

    # ---- Gather heads into the (single) batch dim of the attention einsums.
    # One lane-slice per head per tensor, done once, stacked along a new
    # leading axis: (N, 3H) lane-groups -> (nH*B, S, hd) head-major operands.
    def gather_heads(base):
        cols = [qkv[:, base + h * hd: base + (h + 1) * hd] for h in range(nH)]
        return jnp.concatenate(cols, axis=0).reshape(nH * B, S, hd)

    q = gather_heads(0)          # (nH*B, S, hd)  row x = h*B + b
    k = gather_heads(H)
    v = gather_heads(2 * H)

    # ---- Head-batched attention: ONE pair of batched dots + ONE softmax.
    s = jnp.einsum('xqd,xkd->xqk',
                   q.astype(jnp.bfloat16), k.astype(jnp.bfloat16),
                   preferred_element_type=jnp.float32)      # (nH*B, S, S)
    s = s - jnp.max(s, axis=-1, keepdims=True)
    p = jnp.exp(s)
    p = p * pl.reciprocal(jnp.sum(p, axis=-1, keepdims=True), approx=True)
    ctx = jnp.einsum('xqk,xkd->xqd',
                     p.astype(jnp.bfloat16), v.astype(jnp.bfloat16),
                     preferred_element_type=jnp.float32)    # (nH*B, S, hd)

    # ---- Output projection with the concat-over-heads folded into the
    # contraction:  out = sum_h ctx_h @ Wo[h]  (+ bo).  No VMEM scratch, no
    # masked lane-offset stores; ctx_h slices are leading-dim (free) and Wo
    # is already split per head.
    out = jnp.zeros((N, H), jnp.float32)
    for h in range(nH):
        ctx_h = ctx[h * B:(h + 1) * B].reshape(N, hd)       # rows n = b*S + s
        out = out + jnp.dot(ctx_h.astype(jnp.bfloat16), wo_ref[h],
                            preferred_element_type=jnp.float32)
    out = out + bo_ref[...]
    o_ref[...] = out.reshape(B, S, H)


def mhsa(x, wqkv, bqkv, wo_heads, bo, num_heads):
    B, S, Din = x.shape
    nH, hd, H = wo_heads.shape
    assert nH == num_heads and nH * hd == H
    kern = functools.partial(mhsa_kernel, num_heads=num_heads, head_dim=hd,
                             batch=B, seq=S)
    # NOTE: at larger B*S, switch to a "parallel" row-block grid axis (2 TCs
    # on v7x) and flash-style tiling over S; at B*S=32 grid=(1,) is fastest.
    return pl.pallas_call(
        kern,
        out_shape=jax.ShapeDtypeStruct((B, S, H), jnp.float32),
        grid=(1,),
        in_specs=[
            pl.BlockSpec((B, S, Din), lambda i: (0, 0, 0)),
            pl.BlockSpec((Din, 3 * H), lambda i: (0, 0)),
            pl.BlockSpec((1, 3 * H), lambda i: (0, 0)),
            pl.BlockSpec((nH, hd, H), lambda i: (0, 0, 0)),
            pl.BlockSpec((1, H), lambda i: (0, 0)),
        ],
        out_specs=pl.BlockSpec((B, S, H), lambda i: (0, 0, 0)),
        compiler_params=pltpu.CompilerParams(
            dimension_semantics=("arbitrary",)),
    )(x, wqkv, bqkv, wo_heads, bo)


# ----------------------------------------------------------------------------
# Pure-JAX reference (mirrors the PyTorch module exactly; weights stored as
# (in, out), i.e. the transpose of nn.Linear's (out, in)).
# ----------------------------------------------------------------------------
def mhsa_reference(x, params, num_heads):
    B, S, _ = x.shape
    H = params["wo"].shape[1]
    hd = H // num_heads
    q = x @ params["wq"] + params["bq"]
    k = x @ params["wk"] + params["bk"]
    v = x @ params["wv"] + params["bv"]
    q = q.reshape(B, S, num_heads, hd).transpose(0, 2, 1, 3)
    k = k.reshape(B, S, num_heads, hd).transpose(0, 2, 1, 3)
    v = v.reshape(B, S, num_heads, hd).transpose(0, 2, 1, 3)
    s = jnp.einsum('bhqd,bhkd->bhqk', q, k) / np.sqrt(hd)
    p = jax.nn.softmax(s, axis=-1)
    ctx = jnp.einsum('bhqk,bhkd->bhqd', p, v)
    ctx = ctx.transpose(0, 2, 1, 3).reshape(B, S, H)
    return ctx @ params["wo"] + params["bo"]


# ----------------------------------------------------------------------------
# Deterministic parameter init (PyTorch nn.Linear fan-in scale) + packing.
# ----------------------------------------------------------------------------
def init_mhsa_params(key, input_dim, hidden_dim):
    def dense(k, din, dout):
        kw, kb = jax.random.split(k)
        bound = 1.0 / np.sqrt(din)
        w = jax.random.uniform(kw, (din, dout), jnp.float32, -bound, bound)
        b = jax.random.uniform(kb, (dout,), jnp.float32, -bound, bound)
        return w, b
    kq, kk, kv, ko = jax.random.split(key, 4)
    wq, bq = dense(kq, input_dim, hidden_dim)
    wk, bk = dense(kk, input_dim, hidden_dim)
    wv, bv = dense(kv, input_dim, hidden_dim)
    wo, bo = dense(ko, hidden_dim, hidden_dim)
    return dict(wq=wq, bq=bq, wk=wk, bk=bk, wv=wv, bv=bv, wo=wo, bo=bo)


def pack_mhsa_params(params, num_heads):
    """Free, host-side transforms: fold 1/sqrt(hd) into the Q projection,
    pack QKV into one (Din, 3H) weight, split Wo per head, cast MXU weights
    to bf16 (biases stay f32)."""
    H = params["wo"].shape[1]
    hd = H // num_heads
    scale = 1.0 / float(np.sqrt(hd))
    wqkv = jnp.concatenate(
        [params["wq"] * scale, params["wk"], params["wv"]],
        axis=1).astype(jnp.bfloat16)                         # (Din, 3H)
    bqkv = jnp.concatenate(
        [params["bq"] * scale, params["bk"], params["bv"]]).reshape(1, -1)
    wo_heads = params["wo"].reshape(num_heads, hd, H).astype(jnp.bfloat16)
    bo = params["bo"].reshape(1, H)
    return wqkv, bqkv, wo_heads, bo


# ----------------------------------------------------------------------------
if __name__ == "__main__":
    B = 2
    seq_len = 16
    input_dim = 32
    hidden_dim = 32
    num_heads = 4

    key = jax.random.PRNGKey(0)
    kx, kp = jax.random.split(key)
    x = jax.random.normal(kx, (B, seq_len, input_dim), jnp.float32)
    raw_params = init_mhsa_params(kp, input_dim, hidden_dim)
    wqkv, bqkv, wo_heads, bo = pack_mhsa_params(raw_params, num_heads)

    out = mhsa(x, wqkv, bqkv, wo_heads, bo, num_heads)
    out = jax.block_until_ready(out)

    ref = jax.block_until_ready(mhsa_reference(x, raw_params, num_heads))

    out_np = np.asarray(out)
    ref_np = np.asarray(ref)
    assert out.shape == (B, seq_len, hidden_dim)
    assert np.all(np.isfinite(out_np))
    # Tolerance covers bf16 MXU operands (f32 accumulate) and the approximate
    # (EUP) softmax reciprocal; the reference uses full-f32 weights.
    assert np.allclose(out_np, ref_np, atol=3e-2, rtol=3e-2), (
        float(np.max(np.abs(out_np - ref_np))))
    print("KERNEL_OK")
</pallas_src>

<mosaic_0001>
module attributes {stable_mosaic.version = 11 : i64} {
  func.func @mhsa_kernel(%arg0: i32, %arg1: memref<2x16x32xf32, #tpu.memory_space<vmem>>, %arg2: memref<32x96xbf16, #tpu.memory_space<vmem>>, %arg3: memref<1x96xf32, #tpu.memory_space<vmem>>, %arg4: memref<4x8x32xbf16, #tpu.memory_space<vmem>>, %arg5: memref<1x32xf32, #tpu.memory_space<vmem>>, %arg6: memref<2x16x32xf32, #tpu.memory_space<vmem>>) attributes {dimension_semantics = [#tpu.dimension_semantics<arbitrary>], iteration_bounds = array<i64: 1>, scalar_prefetch = 0 : i64, scratch_operands = 0 : i64, tpu.core_type = #tpu.core_type<tc>, window_params = [{pipeline_mode = #tpu.pipeline_mode<synchronous>, transform_indices = @transform_0, window_bounds = array<i64: 2, 16, 32>}, {pipeline_mode = #tpu.pipeline_mode<synchronous>, transform_indices = @transform_1, window_bounds = array<i64: 32, 96>}, {pipeline_mode = #tpu.pipeline_mode<synchronous>, transform_indices = @transform_2, window_bounds = array<i64: 1, 96>}, {pipeline_mode = #tpu.pipeline_mode<synchronous>, transform_indices = @transform_3, window_bounds = array<i64: 4, 8, 32>}, {pipeline_mode = #tpu.pipeline_mode<synchronous>, transform_indices = @transform_4, window_bounds = array<i64: 1, 32>}, {pipeline_mode = #tpu.pipeline_mode<synchronous>, transform_indices = @transform_5, window_bounds = array<i64: 2, 16, 32>}]} {
    %c0 = arith.constant 0 : index
    %c0_0 = arith.constant 0 : index
    %c0_1 = arith.constant 0 : index
    %0 = vector.load %arg1[%c0, %c0_0, %c0_1] : memref<2x16x32xf32, #tpu.memory_space<vmem>>, vector<2x16x32xf32>
    %1 = vector.shape_cast %0 : vector<2x16x32xf32> to vector<32x32xf32>
    %2 = arith.truncf %1 : vector<32x32xf32> to vector<32x32xbf16>
    %c0_2 = arith.constant 0 : index
    %c0_3 = arith.constant 0 : index
    %3 = vector.load %arg2[%c0_2, %c0_3] : memref<32x96xbf16, #tpu.memory_space<vmem>>, vector<32x96xbf16>
    %cst = arith.constant dense<0.000000e+00> : vector<32x96xf32>
    %4 = tpu.matmul %2, %3, %cst {dimension_numbers = #tpu.dot_dimension_numbers<[1], [0], [0], [1], [0, 0, 1, 1], [], []>} : vector<32x32xbf16>, vector<32x96xbf16>, vector<32x96xf32> -> vector<32x96xf32>
    %c0_4 = arith.constant 0 : index
    %c0_5 = arith.constant 0 : index
    %5 = vector.load %arg3[%c0_4, %c0_5] : memref<1x96xf32, #tpu.memory_space<vmem>>, vector<1x96xf32>
    %6 = vector.broadcast %5 : vector<1x96xf32> to vector<32x96xf32>
    %7 = arith.addf %4, %6 : vector<32x96xf32>
    %8 = vector.extract_strided_slice %7 {offsets = [0, 0], sizes = [32, 8], strides = [1, 1]} : vector<32x96xf32> to vector<32x8xf32>
    %9 = vector.extract_strided_slice %7 {offsets = [0, 8], sizes = [32, 8], strides = [1, 1]} : vector<32x96xf32> to vector<32x8xf32>
    %10 = vector.extract_strided_slice %7 {offsets = [0, 16], sizes = [32, 8], strides = [1, 1]} : vector<32x96xf32> to vector<32x8xf32>
    %11 = vector.extract_strided_slice %7 {offsets = [0, 24], sizes = [32, 8], strides = [1, 1]} : vector<32x96xf32> to vector<32x8xf32>
    %12 = tpu.concatenate %8, %9, %10, %11 in 0 : vector<32x8xf32>, vector<32x8xf32>, vector<32x8xf32>, vector<32x8xf32> -> vector<128x8xf32>
    %13 = vector.shape_cast %12 : vector<128x8xf32> to vector<8x16x8xf32>
    %14 = vector.extract_strided_slice %7 {offsets = [0, 32], sizes = [32, 8], strides = [1, 1]} : vector<32x96xf32> to vector<32x8xf32>
    %15 = vector.extract_strided_slice %7 {offsets = [0, 40], sizes = [32, 8], strides = [1, 1]} : vector<32x96xf32> to vector<32x8xf32>
    %16 = vector.extract_strided_slice %7 {offsets = [0, 48], sizes = [32, 8], strides = [1, 1]} : vector<32x96xf32> to vector<32x8xf32>
    %17 = vector.extract_strided_slice %7 {offsets = [0, 56], sizes = [32, 8], strides = [1, 1]} : vector<32x96xf32> to vector<32x8xf32>
    %18 = tpu.concatenate %14, %15, %16, %17 in 0 : vector<32x8xf32>, vector<32x8xf32>, vector<32x8xf32>, vector<32x8xf32> -> vector<128x8xf32>
    %19 = vector.shape_cast %18 : vector<128x8xf32> to vector<8x16x8xf32>
    %20 = vector.extract_strided_slice %7 {offsets = [0, 64], sizes = [32, 8], strides = [1, 1]} : vector<32x96xf32> to vector<32x8xf32>
    %21 = vector.extract_strided_slice %7 {offsets = [0, 72], sizes = [32, 8], strides = [1, 1]} : vector<32x96xf32> to vector<32x8xf32>
    %22 = vector.extract_strided_slice %7 {offsets = [0, 80], sizes = [32, 8], strides = [1, 1]} : vector<32x96xf32> to vector<32x8xf32>
    %23 = vector.extract_strided_slice %7 {offsets = [0, 88], sizes = [32, 8], strides = [1, 1]} : vector<32x96xf32> to vector<32x8xf32>
    %24 = tpu.concatenate %20, %21, %22, %23 in 0 : vector<32x8xf32>, vector<32x8xf32>, vector<32x8xf32>, vector<32x8xf32> -> vector<128x8xf32>
    %25 = vector.shape_cast %24 : vector<128x8xf32> to vector<8x16x8xf32>
    %26 = arith.truncf %13 : vector<8x16x8xf32> to vector<8x16x8xbf16>
    %27 = arith.truncf %19 : vector<8x16x8xf32> to vector<8x16x8xbf16>
    "tpu.trace_start"() <{level = 10 : i32, message = "xqd,xkd->xqk"}> : () -> ()
    %cst_6 = arith.constant dense<0.000000e+00> : vector<8x16x16xf32>
    %28 = tpu.matmul %26, %27, %cst_6 {dimension_numbers = #tpu.dot_dimension_numbers<[2], [2], [1], [1], [0, 0, 0, 1, 1, 1], [0], [0]>} : vector<8x16x8xbf16>, vector<8x16x8xbf16>, vector<8x16x16xf32> -> vector<8x16x16xf32>
    "tpu.trace_stop"() : () -> ()
    %cst_7 = arith.constant dense<0xFF800000> : vector<8x16xf32>
    %29 = vector.multi_reduction <maximumf>, %28, %cst_7 [2] : vector<8x16x16xf32> to vector<8x16xf32>
    %30 = vector.shape_cast %29 : vector<8x16xf32> to vector<8x16x1xf32>
    %31 = vector.broadcast %30 : vector<8x16x1xf32> to vector<8x16x16xf32>
    %32 = arith.subf %28, %31 : vector<8x16x16xf32>
    %33 = math.exp %32 : vector<8x16x16xf32>
    %cst_8 = arith.constant dense<0.000000e+00> : vector<8x16xf32>
    %34 = vector.multi_reduction <add>, %33, %cst_8 [2] : vector<8x16x16xf32> to vector<8x16xf32>
    %35 = vector.shape_cast %34 : vector<8x16xf32> to vector<8x16x1xf32>
    %36 = tpu.reciprocal %35 {approx = true} : vector<8x16x1xf32> -> vector<8x16x1xf32>
    %37 = vector.broadcast %36 : vector<8x16x1xf32> to vector<8x16x16xf32>
    %38 = arith.mulf %33, %37 : vector<8x16x16xf32>
    %39 = arith.truncf %38 : vector<8x16x16xf32> to vector<8x16x16xbf16>
    %40 = arith.truncf %25 : vector<8x16x8xf32> to vector<8x16x8xbf16>
    "tpu.trace_start"() <{level = 10 : i32, message = "xqk,xkd->xqd"}> : () -> ()
    %cst_9 = arith.constant dense<0.000000e+00> : vector<8x16x8xf32>
    %41 = tpu.matmul %39, %40, %cst_9 {dimension_numbers = #tpu.dot_dimension_numbers<[2], [1], [1], [2], [0, 0, 0, 1, 1, 2], [0], [0]>} : vector<8x16x16xbf16>, vector<8x16x8xbf16>, vector<8x16x8xf32> -> vector<8x16x8xf32>
    %cst_10 = arith.constant 0.000000e+00 : f32
    "tpu.trace_stop"() : () -> ()
    %42 = vector.broadcast %cst_10 : f32 to vector<32x32xf32>
    %43 = vector.extract_strided_slice %41 {offsets = [0, 0, 0], sizes = [2, 16, 8], strides = [1, 1, 1]} : vector<8x16x8xf32> to vector<2x16x8xf32>
    %44 = vector.shape_cast %43 : vector<2x16x8xf32> to vector<32x8xf32>
    %45 = arith.truncf %44 : vector<32x8xf32> to vector<32x8xbf16>
    %c0_11 = arith.constant 0 : index
    %c0_12 = arith.constant 0 : index
    %c0_13 = arith.constant 0 : index
    %46 = vector.load %arg4[%c0_11, %c0_12, %c0_13] : memref<4x8x32xbf16, #tpu.memory_space<vmem>>, vector<1x8x32xbf16>
    %47 = vector.shape_cast %46 : vector<1x8x32xbf16> to vector<8x32xbf16>
    %cst_14 = arith.constant dense<0.000000e+00> : vector<32x32xf32>
    %48 = tpu.matmul %45, %47, %cst_14 {dimension_numbers = #tpu.dot_dimension_numbers<[1], [0], [0], [1], [0, 0, 1, 1], [], []>} : vector<32x8xbf16>, vector<8x32xbf16>, vector<32x32xf32> -> vector<32x32xf32>
    %49 = arith.addf %42, %48 : vector<32x32xf32>
    %50 = vector.extract_strided_slice %41 {offsets = [2, 0, 0], sizes = [2, 16, 8], strides = [1, 1, 1]} : vector<8x16x8xf32> to vector<2x16x8xf32>
    %51 = vector.shape_cast %50 : vector<2x16x8xf32> to vector<32x8xf32>
    %52 = arith.truncf %51 : vector<32x8xf32> to vector<32x8xbf16>
    %c1 = arith.constant 1 : index
    %c0_15 = arith.constant 0 : index
    %c0_16 = arith.constant 0 : index
    %53 = vector.load %arg4[%c1, %c0_15, %c0_16] : memref<4x8x32xbf16, #tpu.memory_space<vmem>>, vector<1x8x32xbf16>
    %54 = vector.shape_cast %53 : vector<1x8x32xbf16> to vector<8x32xbf16>
    %cst_17 = arith.constant dense<0.000000e+00> : vector<32x32xf32>
    %55 = tpu.matmul %52, %54, %cst_17 {dimension_numbers = #tpu.dot_dimension_numbers<[1], [0], [0], [1], [0, 0, 1, 1], [], []>} : vector<32x8xbf16>, vector<8x32xbf16>, vector<32x32xf32> -> vector<32x32xf32>
    %56 = arith.addf %49, %55 : vector<32x32xf32>
    %57 = vector.extract_strided_slice %41 {offsets = [4, 0, 0], sizes = [2, 16, 8], strides = [1, 1, 1]} : vector<8x16x8xf32> to vector<2x16x8xf32>
    %58 = vector.shape_cast %57 : vector<2x16x8xf32> to vector<32x8xf32>
    %59 = arith.truncf %58 : vector<32x8xf32> to vector<32x8xbf16>
    %c2 = arith.constant 2 : index
    %c0_18 = arith.constant 0 : index
    %c0_19 = arith.constant 0 : index
    %60 = vector.load %arg4[%c2, %c0_18, %c0_19] : memref<4x8x32xbf16, #tpu.memory_space<vmem>>, vector<1x8x32xbf16>
    %61 = vector.shape_cast %60 : vector<1x8x32xbf16> to vector<8x32xbf16>
    %cst_20 = arith.constant dense<0.000000e+00> : vector<32x32xf32>
    %62 = tpu.matmul %59, %61, %cst_20 {dimension_numbers = #tpu.dot_dimension_numbers<[1], [0], [0], [1], [0, 0, 1, 1], [], []>} : vector<32x8xbf16>, vector<8x32xbf16>, vector<32x32xf32> -> vector<32x32xf32>
    %63 = arith.addf %56, %62 : vector<32x32xf32>
    %64 = vector.extract_strided_slice %41 {offsets = [6, 0, 0], sizes = [2, 16, 8], strides = [1, 1, 1]} : vector<8x16x8xf32> to vector<2x16x8xf32>
    %65 = vector.shape_cast %64 : vector<2x16x8xf32> to vector<32x8xf32>
    %66 = arith.truncf %65 : vector<32x8xf32> to vector<32x8xbf16>
    %c3 = arith.constant 3 : index
    %c0_21 = arith.constant 0 : index
    %c0_22 = arith.constant 0 : index
    %67 = vector.load %arg4[%c3, %c0_21, %c0_22] : memref<4x8x32xbf16, #tpu.memory_space<vmem>>, vector<1x8x32xbf16>
    %68 = vector.shape_cast %67 : vector<1x8x32xbf16> to vector<8x32xbf16>
    %cst_23 = arith.constant dense<0.000000e+00> : vector<32x32xf32>
    %69 = tpu.matmul %66, %68, %cst_23 {dimension_numbers = #tpu.dot_dimension_numbers<[1], [0], [0], [1], [0, 0, 1, 1], [], []>} : vector<32x8xbf16>, vector<8x32xbf16>, vector<32x32xf32> -> vector<32x32xf32>
    %70 = arith.addf %63, %69 : vector<32x32xf32>
    %c0_24 = arith.constant 0 : index
    %c0_25 = arith.constant 0 : index
    %71 = vector.load %arg5[%c0_24, %c0_25] : memref<1x32xf32, #tpu.memory_space<vmem>>, vector<1x32xf32>
    %72 = vector.broadcast %71 : vector<1x32xf32> to vector<32x32xf32>
    %73 = arith.addf %70, %72 : vector<32x32xf32>
    %74 = vector.shape_cast %73 : vector<32x32xf32> to vector<2x16x32xf32>
    %c0_26 = arith.constant 0 : index
    %c0_27 = arith.constant 0 : index
    %c0_28 = arith.constant 0 : index
    %75 = vector.load %arg6[%c0_26, %c0_27, %c0_28] : memref<2x16x32xf32, #tpu.memory_space<vmem>>, vector<2x16x32xf32>
    tpu.vector_store %arg6[%c0_26, %c0_27, %c0_28], %74 {strides = array<i32>} : memref<2x16x32xf32, #tpu.memory_space<vmem>>, vector<2x16x32xf32>,
    return
  }
  func.func @transform_0(%arg0: i32) -> (i32, i32, i32) {
    %c0_i32 = arith.constant 0 : i32
    %c0_i32_0 = arith.constant 0 : i32
    %c0_i32_1 = arith.constant 0 : i32
    %c0_i32_2 = arith.constant 0 : i32
    return %c0_i32, %c0_i32_0, %c0_i32_1 : i32, i32, i32
  }
  func.func @transform_1(%arg0: i32) -> (i32, i32) {
    %c0_i32 = arith.constant 0 : i32
    %c0_i32_0 = arith.constant 0 : i32
    %c0_i32_1 = arith.constant 0 : i32
    return %c0_i32, %c0_i32_0 : i32, i32
  }
  func.func @transform_2(%arg0: i32) -> (i32, i32) {
    %c0_i32 = arith.constant 0 : i32
    %c0_i32_0 = arith.constant 0 : i32
    %c0_i32_1 = arith.constant 0 : i32
    return %c0_i32, %c0_i32_0 : i32, i32
  }
  func.func @transform_3(%arg0: i32) -> (i32, i32, i32) {
    %c0_i32 = arith.constant 0 : i32
    %c0_i32_0 = arith.constant 0 : i32
    %c0_i32_1 = arith.constant 0 : i32
    %c0_i32_2 = arith.constant 0 : i32
    return %c0_i32, %c0_i32_0, %c0_i32_1 : i32, i32, i32
  }
  func.func @transform_4(%arg0: i32) -> (i32, i32) {
    %c0_i32 = arith.constant 0 : i32
    %c0_i32_0 = arith.constant 0 : i32
    %c0_i32_1 = arith.constant 0 : i32
    return %c0_i32, %c0_i32_0 : i32, i32
  }
  func.func @transform_5(%arg0: i32) -> (i32, i32, i32) {
    %c0_i32 = arith.constant 0 : i32
    %c0_i32_0 = arith.constant 0 : i32
    %c0_i32_1 = arith.constant 0 : i32
    %c0_i32_2 = arith.constant 0 : i32
    return %c0_i32, %c0_i32_0, %c0_i32_1 : i32, i32, i32
  }
}

</mosaic_0001>

<llo_original>
// kernel: tpu_custom_call.1
$region0: #{tpu_custom_call.1}
  #allocation0 [shape = 'u32[]', space=smem, size = 0x4, offset = 0x4, fixed_abs, tag = 'smem constant byte address 0x4 - core index']
  #allocation1 [shape = 'u32[144,128]{1,0:T(1,128)}', space=vmem, size = 0x12000, scoped, tag = 'internal scratch']
  %s0 = inlined_call_operand.hbm [shape: f32[2,16,32], index: 0, kind: input, shape index: {}]
  %s1 = inlined_call_operand.hbm [shape: bf16[32,96], index: 1, kind: input, shape index: {}]
  %s2 = inlined_call_operand.vmem [shape: f32[1,96], index: 2, kind: input, shape index: {}]
  %s3 = inlined_call_operand.hbm [shape: bf16[4,8,32], index: 3, kind: input, shape index: {}]
  %s4 = inlined_call_operand.vmem [shape: f32[1,32], index: 4, kind: input, shape index: {}]
  %s5 = inlined_call_operand.hbm [shape: f32[2,16,32], index: 5, kind: output, shape index: {}]
  %s6 = sld [smem:[#allocation0]]
  $region42: #{tpu_custom_call.1} parent=0
    _
  %s8 = ssub.s32 1, %s6
  %s9 = scalar_select 0, %s8, %s6
  $region1: #{tpu_custom_call.1} parent=0
    #allocation2 [shape = 'u8[16384]{0}', space=vmem, size = 0x4000, scoped, tag = 'input window, operand 0, single buffered']
    #allocation3 [shape = 's32[1]{0}', space=sflag, size = 0x4, scoped, tag = 'scoped memory for tpu_custom_call.1']
    #allocation4 [shape = 's32[1]{0}', space=sflag, size = 0x4, scoped, tag = 'scoped memory for tpu_custom_call.1']
    #allocation5 [shape = 'u8[8192]{0}', space=vmem, size = 0x2000, scoped, tag = 'input window, operand 1, single buffered']
    #allocation6 [shape = 's32[1]{0}', space=sflag, size = 0x4, scoped, tag = 'scoped memory for tpu_custom_call.1']
    #allocation7 [shape = 'u8[8192]{0}', space=vmem, size = 0x2000, scoped, tag = 'input window, operand 3, single buffered']
    #allocation8 [shape = 'u8[16384]{0}', space=vmem, size = 0x4000, scoped, tag = 'output window, operand 0, single buffered']
    %10 = vsyncpa [#allocation3], 0
    %11 = vsyncpa [#allocation6], 0
    %12 = vsyncpa [#allocation4], 0
    // Predicated region
    $region2: #{tpu_custom_call.1} parent=1 // pred_check
      _
    $region3: #{tpu_custom_call.1} parent=1 // pred_check_branch
      %14 = sbr.rel (0) target = $region5
    $region4: #{tpu_custom_call.1} parent=1 // pred_region
      %s16 = ssub.s32 512, 512
      %17 = vsyncadd [#allocation3], %s16
      %s18 = sshll.u32 [#allocation2], 4
      %s19 = int_to_ptr.vmem [resolvable:$true] %s18
      %24 = dma.hbm_to_vmem [thread:$0]  %s0, 512, %s19, [#allocation3], 128, 128, 8
    $region5: #{tpu_custom_call.1} parent=1 // pred_fallthru
      _
    // Predicated region
    $region6: #{tpu_custom_call.1} parent=1 // pred_check
      _
    $region7: #{tpu_custom_call.1} parent=1 // pred_check_branch
      %26 = sbr.rel (0) target = $region9
    $region8: #{tpu_custom_call.1} parent=1 // pred_region
      %s28 = ssub.s32 256, 256
      %29 = vsyncadd [#allocation6], %s28
      %s30 = sshll.u32 [#allocation5], 4
      %s31 = int_to_ptr.vmem [resolvable:$true] %s30
      %36 = dma.hbm_to_vmem [thread:$0]  %s1, 256, %s31, [#allocation6], 64, 64, 4
    $region9: #{tpu_custom_call.1} parent=1 // pred_fallthru
      _
    // Predicated region
    $region10: #{tpu_custom_call.1} parent=1 // pred_check
      _
    $region11: #{tpu_custom_call.1} parent=1 // pred_check_branch
      %38 = sbr.rel (0) target = $region13
    $region12: #{tpu_custom_call.1} parent=1 // pred_region
      _
    $region13: #{tpu_custom_call.1} parent=1 // pred_fallthru
      _
    // Predicated region
    $region14: #{tpu_custom_call.1} parent=1 // pred_check
      _
    $region15: #{tpu_custom_call.1} parent=1 // pred_check_branch
      %40 = sbr.rel (0) target = $region17
    $region16: #{tpu_custom_call.1} parent=1 // pred_region
      %s42 = ssub.s32 256, 256
      %43 = vsyncadd [#allocation6], %s42
      %s44 = sshll.u32 [#allocation7], 4
      %s45 = int_to_ptr.vmem [resolvable:$true] %s44
      %50 = dma.hbm_to_vmem [thread:$0]  %s3, 256, %s45, [#allocation6], 64, 64, 4
    $region17: #{tpu_custom_call.1} parent=1 // pred_fallthru
      _
    // Predicated region
    $region18: #{tpu_custom_call.1} parent=1 // pred_check
      _
    $region19: #{tpu_custom_call.1} parent=1 // pred_check_branch
      %52 = sbr.rel (0) target = $region21
    $region20: #{tpu_custom_call.1} parent=1 // pred_region
      _
    $region21: #{tpu_custom_call.1} parent=1 // pred_fallthru
      _
    // Predicated region
    $region22: #{tpu_custom_call.1} parent=1 // pred_check
      _
    $region23: #{tpu_custom_call.1} parent=1 // pred_check_branch
      %54 = sbr.rel (0) target = $region25
    $region24: #{tpu_custom_call.1} parent=1 // pred_region
      %55 = dma.done [#allocation3], 512
    $region25: #{tpu_custom_call.1} parent=1 // pred_fallthru
      _
    // Predicated region
    $region26: #{tpu_custom_call.1} parent=1 // pred_check
      _
    $region27: #{tpu_custom_call.1} parent=1 // pred_check_branch
      %57 = sbr.rel (0) target = $region29
    $region28: #{tpu_custom_call.1} parent=1 // pred_region
      %58 = dma.done [#allocation6], 256
    $region29: #{tpu_custom_call.1} parent=1 // pred_fallthru
      _
    // Predicated region
    $region30: #{tpu_custom_call.1} parent=1 // pred_check
      _
    $region31: #{tpu_custom_call.1} parent=1 // pred_check_branch
      %60 = sbr.rel (0) target = $region33
    $region32: #{tpu_custom_call.1} parent=1 // pred_region
      %61 = dma.done [#allocation6], 256
    $region33: #{tpu_custom_call.1} parent=1 // pred_fallthru
      _
    %v63 = vld [vmem:[#allocation2] sm:$0xff]
    %v64 = vld [vmem:[#allocation2 + $0x8] sm:$0xff]
    %v65 = vld [vmem:[#allocation2 + $0x10] sm:$0xff]
    %v66 = vld [vmem:[#allocation2 + $0x18] sm:$0xff]
    %v67 = vpack.c.bf16 %v64, %v63
    %v68 = vpack.c.bf16 %v66, %v65
    %v69 = vld [vmem:[#allocation5] sm:$0xf]
    %v70 = vld [vmem:[#allocation5 + $0x4] sm:$0xf]
    %v71 = vld [vmem:[#allocation5 + $0x8] sm:$0xf]
    %v72 = vld [vmem:[#allocation5 + $0xc] sm:$0xf]
    %v73 = vld [vmem:[%s2] sm:$0x1]
    %v75 = vlaneseq
    %v76 = vshrl.u32 %v75, 7
    %v77 = vsub.s32 0, %v76
    %v78 = vrot.slane %v73, %v77
    %v84 = vunpack.c.l.b16 %v69
    %v85 = vunpack.c.l.b16 %v70
    %v86 = vunpack.c.l.b16 %v71
    %v87 = vunpack.c.l.b16 %v72
    %v88 = vpack.c.b16 %v85, %v84
    %v89 = vpack.c.b16 %v87, %v86
    %vm92 = vcmask 261120
    %v94 = vsel %vm92, %v67, 0
    %v97 = vsel %vm92, %v68, 0
    %99 = vmatprep.subr.bf16.mxu0 0
    %100 = vmatpush1.bf16.msra.mxu0 0
    %101 = vmatprep.subr.bf16.mxu0 0
    %102 = vmatpush1.bf16.msra.mxu0 0
    %103 = vmatprep.subr.bf16.mxu0 0
    %104 = vmatpush1.bf16.msra.mxu0 0
    %105 = vmatprep.subr.bf16.mxu0 0
    %106 = vmatpush1.bf16.msra.mxu0 0
    %107 = vmatprep.subr.bf16.mxu0 0
    %108 = vmatpush1.bf16.msra.mxu0 0
    %109 = vmatprep.subr.bf16.mxu0 0
    %110 = vmatpush1.bf16.msra.mxu0 0
    %111 = vmatprep.subr.bf16.mxu0 0
    %112 = vmatpush1.bf16.msra.mxu0 %v89
    %113 = vmatprep.subr.bf16.mxu0 0
    %114 = vmatpush1.bf16.msra.mxu0 %v88
    %115 = vmatprep.subr.bf16.mxu0 0
    %116 = vmatpush2.bf16.msra.mxu0 0
    %117 = vmatprep.subr.bf16.mxu0 0
    %118 = vmatpush2.bf16.msra.mxu0 0
    %119 = vmatprep.subr.bf16.mxu0 0
    %120 = vmatpush2.bf16.msra.mxu0 0
    %121 = vmatprep.subr.bf16.mxu0 0
    %122 = vmatpush2.bf16.msra.mxu0 0
    %123 = vmatprep.subr.bf16.mxu0 0
    %124 = vmatpush2.bf16.msra.mxu0 0
    %125 = vmatprep.subr.bf16.mxu0 0
    %126 = vmatpush2.bf16.msra.mxu0 0
    %127 = vmatprep.subr.bf16.mxu0 0
    %128 = vmatpush2.bf16.msra.mxu0 0
    %129 = vmatprep.subr.bf16.mxu0 0
    %130 = vmatpush2.bf16.msra.mxu0 0
    %131 = vmatprep.mubr.bf16.mxu0 0
    %132 = vmatmul.mubr.bf16.gmra.mxu0 %v94
    %v133 = vpop.f32.mrf.mxu0
    %v134 = vadd.f32 %v78, %v133
    %v135 = vpop.f32.mrf.mxu0
    %v136 = vpop.f32.mrf.mxu0
    %v137 = vadd.f32 %v78, %v136
    %v138 = vpop.f32.mrf.mxu0
    %139 = vmatprep.mubr.bf16.mxu0 0
    %140 = vmatmul.mubr.bf16.gmra.mxu0 %v97
    %v141 = vpop.f32.mrf.mxu0
    %v142 = vadd.f32 %v78, %v141
    %v143 = vpop.f32.mrf.mxu0
    %v144 = vpop.f32.mrf.mxu0
    %v145 = vadd.f32 %v78, %v144
    %v146 = vpop.f32.mrf.mxu0
    %147 = vdwg.mxu0
    %152 = vrot.lane.b32.xlu0 %v134, 120
    %v153 = vpop.permute.xlu0 %152
    %154 = vrot.lane.b32.xlu0 %v137, 120
    %v155 = vpop.permute.xlu0 %154
    %156 = vrot.lane.b32.xlu0 %v142, 120
    %v157 = vpop.permute.xlu0 %156
    %158 = vrot.lane.b32.xlu0 %v145, 120
    %v159 = vpop.permute.xlu0 %158
    %164 = vrot.lane.b32.xlu0 %v134, 112
    %v165 = vpop.permute.xlu0 %164
    %166 = vrot.lane.b32.xlu0 %v137, 112
    %v167 = vpop.permute.xlu0 %166
    %168 = vrot.lane.b32.xlu0 %v142, 112
    %v169 = vpop.permute.xlu0 %168
    %170 = vrot.lane.b32.xlu0 %v145, 112
    %v171 = vpop.permute.xlu0 %170
    %176 = vrot.lane.b32.xlu0 %v134, 104
    %v177 = vpop.permute.xlu0 %176
    %178 = vrot.lane.b32.xlu0 %v137, 104
    %v179 = vpop.permute.xlu0 %178
    %180 = vrot.lane.b32.xlu0 %v142, 104
    %v181 = vpop.permute.xlu0 %180
    %182 = vrot.lane.b32.xlu0 %v145, 104
    %v183 = vpop.permute.xlu0 %182
    %v188 = vpack.c.bf16 %v137, %v134
    %v189 = vpack.c.bf16 %v145, %v142
    %v190 = vpack.c.bf16 %v155, %v153
    %v191 = vpack.c.bf16 %v159, %v157
    %v192 = vpack.c.bf16 %v167, %v165
    %v193 = vpack.c.bf16 %v171, %v169
    %v194 = vpack.c.bf16 %v179, %v177
    %v195 = vpack.c.bf16 %v183, %v181
    %197 = vrot.lane.b32.xlu0 %v188, 96
    %v198 = vpop.permute.xlu0 %197
    %vm199 = vcmask 64512
    %v201 = vsel %vm199, %v188, 0
    %v204 = vsel %vm199, %v198, 0
    %206 = vmatprep.subr.bf16.mxu0 0
    %207 = vmatpush1.bf16.xpose.msra.mxu0 0
    %208 = vmatprep.subr.bf16.mxu0 0
    %209 = vmatpush1.bf16.xpose.msra.mxu0 0
    %210 = vmatprep.subr.bf16.mxu0 0
    %211 = vmatpush1.bf16.xpose.msra.mxu0 0
    %212 = vmatprep.subr.bf16.mxu0 0
    %213 = vmatpush1.bf16.xpose.msra.mxu0 0
    %214 = vmatprep.subr.bf16.mxu0 0
    %215 = vmatpush1.bf16.xpose.msra.mxu0 0
    %216 = vmatprep.subr.bf16.mxu0 0
    %217 = vmatpush1.bf16.xpose.msra.mxu0 0
    %218 = vmatprep.subr.bf16.mxu0 0
    %219 = vmatpush1.bf16.xpose.msra.mxu0 0
    %220 = vmatprep.subr.bf16.mxu0 0
    %221 = vmatpush1.bf16.xpose.msra.mxu0 %v204
    %222 = vmatprep.subr.bf16.mxu0 0
    %223 = vmatpush2.bf16.xpose.msra.mxu0 0
    %224 = vmatprep.subr.bf16.mxu0 0
    %225 = vmatpush2.bf16.xpose.msra.mxu0 0
    %226 = vmatprep.subr.bf16.mxu0 0
    %227 = vmatpush2.bf16.xpose.msra.mxu0 0
    %228 = vmatprep.subr.bf16.mxu0 0
    %229 = vmatpush2.bf16.xpose.msra.mxu0 0
    %230 = vmatprep.subr.bf16.mxu0 0
    %231 = vmatpush2.bf16.xpose.msra.mxu0 0
    %232 = vmatprep.subr.bf16.mxu0 0
    %233 = vmatpush2.bf16.xpose.msra.mxu0 0
    %234 = vmatprep.subr.bf16.mxu0 0
    %235 = vmatpush2.bf16.xpose.msra.mxu0 0
    %236 = vmatprep.subr.bf16.mxu0 0
    %237 = vmatpush2.bf16.xpose.msra.mxu0 0
    %238 = vmatprep.mubr.bf16.mxu0 0
    %239 = vmatmul.mubr.bf16.gmra.mxu0 %v201
    %v240 = vpop.f32.mrf.mxu0
    %v241 = vadd.f32 0.0, %v240
    %v242 = vpop.f32.mrf.mxu0
    %v243 = vpop.f32.mrf.mxu0
    %v244 = vadd.f32 0.0, %v243
    %v245 = vpop.f32.mrf.mxu0
    %246 = vdwg.mxu0
    %248 = vrot.lane.b32.xlu0 %v189, 96
    %v249 = vpop.permute.xlu0 %248
    %v251 = vsel %vm199, %v189, 0
    %v254 = vsel %vm199, %v249, 0
    %256 = vmatprep.subr.bf16.mxu0 0
    %257 = vmatpush1.bf16.xpose.msra.mxu0 0
    %258 = vmatprep.subr.bf16.mxu0 0
    %259 = vmatpush1.bf16.xpose.msra.mxu0 0
    %260 = vmatprep.subr.bf16.mxu0 0
    %261 = vmatpush1.bf16.xpose.msra.mxu0 0
    %262 = vmatprep.subr.bf16.mxu0 0
    %263 = vmatpush1.bf16.xpose.msra.mxu0 0
    %264 = vmatprep.subr.bf16.mxu0 0
    %265 = vmatpush1.bf16.xpose.msra.mxu0 0
    %266 = vmatprep.subr.bf16.mxu0 0
    %267 = vmatpush1.bf16.xpose.msra.mxu0 0
    %268 = vmatprep.subr.bf16.mxu0 0
    %269 = vmatpush1.bf16.xpose.msra.mxu0 0
    %270 = vmatprep.subr.bf16.mxu0 0
    %271 = vmatpush1.bf16.xpose.msra.mxu0 %v254
    %272 = vmatprep.subr.bf16.mxu0 0
    %273 = vmatpush2.bf16.xpose.msra.mxu0 0
    %274 = vmatprep.subr.bf16.mxu0 0
    %275 = vmatpush2.bf16.xpose.msra.mxu0 0
    %276 = vmatprep.subr.bf16.mxu0 0
    %277 = vmatpush2.bf16.xpose.msra.mxu0 0
    %278 = vmatprep.subr.bf16.mxu0 0
    %279 = vmatpush2.bf16.xpose.msra.mxu0 0
    %280 = vmatprep.subr.bf16.mxu0 0
    %281 = vmatpush2.bf16.xpose.msra.mxu0 0
    %282 = vmatprep.subr.bf16.mxu0 0
    %283 = vmatpush2.bf16.xpose.msra.mxu0 0
    %284 = vmatprep.subr.bf16.mxu0 0
    %285 = vmatpush2.bf16.xpose.msra.mxu0 0
    %286 = vmatprep.subr.bf16.mxu0 0
    %287 = vmatpush2.bf16.xpose.msra.mxu0 0
    %288 = vmatprep.mubr.bf16.mxu0 0
    %289 = vmatmul.mubr.bf16.gmra.mxu0 %v251
    %v290 = vpop.f32.mrf.mxu0
    %v291 = vadd.f32 0.0, %v290
    %v292 = vpop.f32.mrf.mxu0
    %v293 = vpop.f32.mrf.mxu0
    %v294 = vadd.f32 0.0, %v293
    %v295 = vpop.f32.mrf.mxu0
    %296 = vdwg.mxu0
    %298 = vrot.lane.b32.xlu0 %v190, 96
    %v299 = vpop.permute.xlu0 %298
    %v301 = vsel %vm199, %v190, 0
    %v304 = vsel %vm199, %v299, 0
    %306 = vmatprep.subr.bf16.mxu0 0
    %307 = vmatpush1.bf16.xpose.msra.mxu0 0
    %308 = vmatprep.subr.bf16.mxu0 0
    %309 = vmatpush1.bf16.xpose.msra.mxu0 0
    %310 = vmatprep.subr.bf16.mxu0 0
    %311 = vmatpush1.bf16.xpose.msra.mxu0 0
    %312 = vmatprep.subr.bf16.mxu0 0
    %313 = vmatpush1.bf16.xpose.msra.mxu0 0
    %314 = vmatprep.subr.bf16.mxu0 0
    %315 = vmatpush1.bf16.xpose.msra.mxu0 0
    %316 = vmatprep.subr.bf16.mxu0 0
    %317 = vmatpush1.bf16.xpose.msra.mxu0 0
    %318 = vmatprep.subr.bf16.mxu0 0
    %319 = vmatpush1.bf16.xpose.msra.mxu0 0
    %320 = vmatprep.subr.bf16.mxu0 0
    %321 = vmatpush1.bf16.xpose.msra.mxu0 %v304
    %322 = vmatprep.subr.bf16.mxu0 0
    %323 = vmatpush2.bf16.xpose.msra.mxu0 0
    %324 = vmatprep.subr.bf16.mxu0 0
    %325 = vmatpush2.bf16.xpose.msra.mxu0 0
    %326 = vmatprep.subr.bf16.mxu0 0
    %327 = vmatpush2.bf16.xpose.msra.mxu0 0
    %328 = vmatprep.subr.bf16.mxu0 0
    %329 = vmatpush2.bf16.xpose.msra.mxu0 0
    %330 = vmatprep.subr.bf16.mxu0 0
    %331 = vmatpush2.bf16.xpose.msra.mxu0 0
    %332 = vmatprep.subr.bf16.mxu0 0
    %333 = vmatpush2.bf16.xpose.msra.mxu0 0
    %334 = vmatprep.subr.bf16.mxu0 0
    %335 = vmatpush2.bf16.xpose.msra.mxu0 0
    %336 = vmatprep.subr.bf16.mxu0 0
    %337 = vmatpush2.bf16.xpose.msra.mxu0 0
    %338 = vmatprep.mubr.bf16.mxu0 0
    %339 = vmatmul.mubr.bf16.gmra.mxu0 %v301
    %v340 = vpop.f32.mrf.mxu0
    %v341 = vadd.f32 0.0, %v340
    %v342 = vpop.f32.mrf.mxu0
    %v343 = vpop.f32.mrf.mxu0
    %v344 = vadd.f32 0.0, %v343
    %v345 = vpop.f32.mrf.mxu0
    %346 = vdwg.mxu0
    %348 = vrot.lane.b32.xlu0 %v191, 96
    %v349 = vpop.permute.xlu0 %348
    %v351 = vsel %vm199, %v191, 0
    %v354 = vsel %vm199, %v349, 0
    %356 = vmatprep.subr.bf16.mxu0 0
    %357 = vmatpush1.bf16.xpose.msra.mxu0 0
    %358 = vmatprep.subr.bf16.mxu0 0
    %359 = vmatpush1.bf16.xpose.msra.mxu0 0
    %360 = vmatprep.subr.bf16.mxu0 0
    %361 = vmatpush1.bf16.xpose.msra.mxu0 0
    %362 = vmatprep.subr.bf16.mxu0 0
    %363 = vmatpush1.bf16.xpose.msra.mxu0 0
    %364 = vmatprep.subr.bf16.mxu0 0
    %365 = vmatpush1.bf16.xpose.msra.mxu0 0
    %366 = vmatprep.subr.bf16.mxu0 0
    %367 = vmatpush1.bf16.xpose.msra.mxu0 0
    %368 = vmatprep.subr.bf16.mxu0 0
    %369 = vmatpush1.bf16.xpose.msra.mxu0 0
    %370 = vmatprep.subr.bf16.mxu0 0
    %371 = vmatpush1.bf16.xpose.msra.mxu0 %v354
    %372 = vmatprep.subr.bf16.mxu0 0
    %373 = vmatpush2.bf16.xpose.msra.mxu0 0
    %374 = vmatprep.subr.bf16.mxu0 0
    %375 = vmatpush2.bf16.xpose.msra.mxu0 0
    %376 = vmatprep.subr.bf16.mxu0 0
    %377 = vmatpush2.bf16.xpose.msra.mxu0 0
    %378 = vmatprep.subr.bf16.mxu0 0
    %379 = vmatpush2.bf16.xpose.msra.mxu0 0
    %380 = vmatprep.subr.bf16.mxu0 0
    %381 = vmatpush2.bf16.xpose.msra.mxu0 0
    %382 = vmatprep.subr.bf16.mxu0 0
    %383 = vmatpush2.bf16.xpose.msra.mxu0 0
    %384 = vmatprep.subr.bf16.mxu0 0
    %385 = vmatpush2.bf16.xpose.msra.mxu0 0
    %386 = vmatprep.subr.bf16.mxu0 0
    %387 = vmatpush2.bf16.xpose.msra.mxu0 0
    %388 = vmatprep.mubr.bf16.mxu0 0
    %389 = vmatmul.mubr.bf16.gmra.mxu0 %v351
    %v390 = vpop.f32.mrf.mxu0
    %v391 = vadd.f32 0.0, %v390
    %v392 = vpop.f32.mrf.mxu0
    %v393 = vpop.f32.mrf.mxu0
    %v394 = vadd.f32 0.0, %v393
    %v395 = vpop.f32.mrf.mxu0
    %396 = vdwg.mxu0
    %398 = vrot.lane.b32.xlu0 %v192, 96
    %v399 = vpop.permute.xlu0 %398
    %v401 = vsel %vm199, %v192, 0
    %v404 = vsel %vm199, %v399, 0
    %406 = vmatprep.subr.bf16.mxu0 0
    %407 = vmatpush1.bf16.xpose.msra.mxu0 0
    %408 = vmatprep.subr.bf16.mxu0 0
    %409 = vmatpush1.bf16.xpose.msra.mxu0 0
    %410 = vmatprep.subr.bf16.mxu0 0
    %411 = vmatpush1.bf16.xpose.msra.mxu0 0
    %412 = vmatprep.subr.bf16.mxu0 0
    %413 = vmatpush1.bf16.xpose.msra.mxu0 0
    %414 = vmatprep.subr.bf16.mxu0 0
    %415 = vmatpush1.bf16.xpose.msra.mxu0 0
    %416 = vmatprep.subr.bf16.mxu0 0
    %417 = vmatpush1.bf16.xpose.msra.mxu0 0
    %418 = vmatprep.subr.bf16.mxu0 0
    %419 = vmatpush1.bf16.xpose.msra.mxu0 0
    %420 = vmatprep.subr.bf16.mxu0 0
    %421 = vmatpush1.bf16.xpose.msra.mxu0 %v404
    %422 = vmatprep.subr.bf16.mxu0 0
    %423 = vmatpush2.bf16.xpose.msra.mxu0 0
    %424 = vmatprep.subr.bf16.mxu0 0
    %425 = vmatpush2.bf16.xpose.msra.mxu0 0
    %426 = vmatprep.subr.bf16.mxu0 0
    %427 = vmatpush2.bf16.xpose.msra.mxu0 0
    %428 = vmatprep.subr.bf16.mxu0 0
    %429 = vmatpush2.bf16.xpose.msra.mxu0 0
    %430 = vmatprep.subr.bf16.mxu0 0
    %431 = vmatpush2.bf16.xpose.msra.mxu0 0
    %432 = vmatprep.subr.bf16.mxu0 0
    %433 = vmatpush2.bf16.xpose.msra.mxu0 0
    %434 = vmatprep.subr.bf16.mxu0 0
    %435 = vmatpush2.bf16.xpose.msra.mxu0 0
    %436 = vmatprep.subr.bf16.mxu0 0
    %437 = vmatpush2.bf16.xpose.msra.mxu0 0
    %438 = vmatprep.mubr.bf16.mxu0 0
    %439 = vmatmul.mubr.bf16.gmra.mxu0 %v401
    %v440 = vpop.f32.mrf.mxu0
    %v441 = vadd.f32 0.0, %v440
    %v442 = vpop.f32.mrf.mxu0
    %v443 = vpop.f32.mrf.mxu0
    %v444 = vadd.f32 0.0, %v443
    %v445 = vpop.f32.mrf.mxu0
    %446 = vdwg.mxu0
    %448 = vrot.lane.b32.xlu0 %v193, 96
    %v449 = vpop.permute.xlu0 %448
    %v451 = vsel %vm199, %v193, 0
    %v454 = vsel %vm199, %v449, 0
    %456 = vmatprep.subr.bf16.mxu0 0
    %457 = vmatpush1.bf16.xpose.msra.mxu0 0
    %458 = vmatprep.subr.bf16.mxu0 0
    %459 = vmatpush1.bf16.xpose.msra.mxu0 0
    %460 = vmatprep.subr.bf16.mxu0 0
    %461 = vmatpush1.bf16.xpose.msra.mxu0 0
    %462 = vmatprep.subr.bf16.mxu0 0
    %463 = vmatpush1.bf16.xpose.msra.mxu0 0
    %464 = vmatprep.subr.bf16.mxu0 0
    %465 = vmatpush1.bf16.xpose.msra.mxu0 0
    %466 = vmatprep.subr.bf16.mxu0 0
    %467 = vmatpush1.bf16.xpose.msra.mxu0 0
    %468 = vmatprep.subr.bf16.mxu0 0
    %469 = vmatpush1.bf16.xpose.msra.mxu0 0
    %470 = vmatprep.subr.bf16.mxu0 0
    %471 = vmatpush1.bf16.xpose.msra.mxu0 %v454
    %472 = vmatprep.subr.bf16.mxu0 0
    %473 = vmatpush2.bf16.xpose.msra.mxu0 0
    %474 = vmatprep.subr.bf16.mxu0 0
    %475 = vmatpush2.bf16.xpose.msra.mxu0 0
    %476 = vmatprep.subr.bf16.mxu0 0
    %477 = vmatpush2.bf16.xpose.msra.mxu0 0
    %478 = vmatprep.subr.bf16.mxu0 0
    %479 = vmatpush2.bf16.xpose.msra.mxu0 0
    %480 = vmatprep.subr.bf16.mxu0 0
    %481 = vmatpush2.bf16.xpose.msra.mxu0 0
    %482 = vmatprep.subr.bf16.mxu0 0
    %483 = vmatpush2.bf16.xpose.msra.mxu0 0
    %484 = vmatprep.subr.bf16.mxu0 0
    %485 = vmatpush2.bf16.xpose.msra.mxu0 0
    %486 = vmatprep.subr.bf16.mxu0 0
    %487 = vmatpush2.bf16.xpose.msra.mxu0 0
    %488 = vmatprep.mubr.bf16.mxu0 0
    %489 = vmatmul.mubr.bf16.gmra.mxu0 %v451
    %v490 = vpop.f32.mrf.mxu0
    %v491 = vadd.f32 0.0, %v490
    %v492 = vpop.f32.mrf.mxu0
    %v493 = vpop.f32.mrf.mxu0
    %v494 = vadd.f32 0.0, %v493
    %v495 = vpop.f32.mrf.mxu0
    %496 = vdwg.mxu0
    %498 = vrot.lane.b32.xlu0 %v194, 96
    %v499 = vpop.permute.xlu0 %498
    %v501 = vsel %vm199, %v194, 0
    %v504 = vsel %vm199, %v499, 0
    %506 = vmatprep.subr.bf16.mxu0 0
    %507 = vmatpush1.bf16.xpose.msra.mxu0 0
    %508 = vmatprep.subr.bf16.mxu0 0
    %509 = vmatpush1.bf16.xpose.msra.mxu0 0
    %510 = vmatprep.subr.bf16.mxu0 0
    %511 = vmatpush1.bf16.xpose.msra.mxu0 0
    %512 = vmatprep.subr.bf16.mxu0 0
    %513 = vmatpush1.bf16.xpose.msra.mxu0 0
    %514 = vmatprep.subr.bf16.mxu0 0
    %515 = vmatpush1.bf16.xpose.msra.mxu0 0
    %516 = vmatprep.subr.bf16.mxu0 0
    %517 = vmatpush1.bf16.xpose.msra.mxu0 0
    %518 = vmatprep.subr.bf16.mxu0 0
    %519 = vmatpush1.bf16.xpose.msra.mxu0 0
    %520 = vmatprep.subr.bf16.mxu0 0
    %521 = vmatpush1.bf16.xpose.msra.mxu0 %v504
    %522 = vmatprep.subr.bf16.mxu0 0
    %523 = vmatpush2.bf16.xpose.msra.mxu0 0
    %524 = vmatprep.subr.bf16.mxu0 0
    %525 = vmatpush2.bf16.xpose.msra.mxu0 0
    %526 = vmatprep.subr.bf16.mxu0 0
    %527 = vmatpush2.bf16.xpose.msra.mxu0 0
    %528 = vmatprep.subr.bf16.mxu0 0
    %529 = vmatpush2.bf16.xpose.msra.mxu0 0
    %530 = vmatprep.subr.bf16.mxu0 0
    %531 = vmatpush2.bf16.xpose.msra.mxu0 0
    %532 = vmatprep.subr.bf16.mxu0 0
    %533 = vmatpush2.bf16.xpose.msra.mxu0 0
    %534 = vmatprep.subr.bf16.mxu0 0
    %535 = vmatpush2.bf16.xpose.msra.mxu0 0
    %536 = vmatprep.subr.bf16.mxu0 0
    %537 = vmatpush2.bf16.xpose.msra.mxu0 0
    %538 = vmatprep.mubr.bf16.mxu0 0
    %539 = vmatmul.mubr.bf16.gmra.mxu0 %v501
    %v540 = vpop.f32.mrf.mxu0
    %v541 = vadd.f32 0.0, %v540
    %v542 = vpop.f32.mrf.mxu0
    %v543 = vpop.f32.mrf.mxu0
    %v544 = vadd.f32 0.0, %v543
    %v545 = vpop.f32.mrf.mxu0
    %546 = vdwg.mxu0
    %548 = vrot.lane.b32.xlu0 %v195, 96
    %v549 = vpop.permute.xlu0 %548
    %v551 = vsel %vm199, %v195, 0
    %v554 = vsel %vm199, %v549, 0
    %556 = vmatprep.subr.bf16.mxu0 0
    %557 = vmatpush1.bf16.xpose.msra.mxu0 0
    %558 = vmatprep.subr.bf16.mxu0 0
    %559 = vmatpush1.bf16.xpose.msra.mxu0 0
    %560 = vmatprep.subr.bf16.mxu0 0
    %561 = vmatpush1.bf16.xpose.msra.mxu0 0
    %562 = vmatprep.subr.bf16.mxu0 0
    %563 = vmatpush1.bf16.xpose.msra.mxu0 0
    %564 = vmatprep.subr.bf16.mxu0 0
    %565 = vmatpush1.bf16.xpose.msra.mxu0 0
    %566 = vmatprep.subr.bf16.mxu0 0
    %567 = vmatpush1.bf16.xpose.msra.mxu0 0
    %568 = vmatprep.subr.bf16.mxu0 0
    %569 = vmatpush1.bf16.xpose.msra.mxu0 0
    %570 = vmatprep.subr.bf16.mxu0 0
    %571 = vmatpush1.bf16.xpose.msra.mxu0 %v554
    %572 = vmatprep.subr.bf16.mxu0 0
    %573 = vmatpush2.bf16.xpose.msra.mxu0 0
    %574 = vmatprep.subr.bf16.mxu0 0
    %575 = vmatpush2.bf16.xpose.msra.mxu0 0
    %576 = vmatprep.subr.bf16.mxu0 0
    %577 = vmatpush2.bf16.xpose.msra.mxu0 0
    %578 = vmatprep.subr.bf16.mxu0 0
    %579 = vmatpush2.bf16.xpose.msra.mxu0 0
    %580 = vmatprep.subr.bf16.mxu0 0
    %581 = vmatpush2.bf16.xpose.msra.mxu0 0
    %582 = vmatprep.subr.bf16.mxu0 0
    %583 = vmatpush2.bf16.xpose.msra.mxu0 0
    %584 = vmatprep.subr.bf16.mxu0 0
    %585 = vmatpush2.bf16.xpose.msra.mxu0 0
    %586 = vmatprep.subr.bf16.mxu0 0
    %587 = vmatpush2.bf16.xpose.msra.mxu0 0
    %588 = vmatprep.mubr.bf16.mxu0 0
    %589 = vmatmul.mubr.bf16.gmra.mxu0 %v551
    %v590 = vpop.f32.mrf.mxu0
    %v591 = vadd.f32 0.0, %v590
    %v592 = vpop.f32.mrf.mxu0
    %v593 = vpop.f32.mrf.mxu0
    %v594 = vadd.f32 0.0, %v593
    %v595 = vpop.f32.mrf.mxu0
    %596 = vdwg.mxu0
    %vm597 = vcmask 130048
    %v598 = vsel %vm597, %v241, -inf
    %599 = vmax.xlane.f32.xlu0 %v598
    %v600 = vpop.xlane.xlu0 %599
    %v601 = vsel %vm597, %v244, -inf
    %602 = vmax.xlane.f32.xlu0 %v601
    %v603 = vpop.xlane.xlu0 %602
    %v604 = vsel %vm597, %v291, -inf
    %605 = vmax.xlane.f32.xlu0 %v604
    %v606 = vpop.xlane.xlu0 %605
    %v607 = vsel %vm597, %v294, -inf
    %608 = vmax.xlane.f32.xlu0 %v607
    %v609 = vpop.xlane.xlu0 %608
    %v610 = vsel %vm597, %v341, -inf
    %611 = vmax.xlane.f32.xlu0 %v610
    %v612 = vpop.xlane.xlu0 %611
    %v613 = vsel %vm597, %v344, -inf
    %614 = vmax.xlane.f32.xlu0 %v613
    %v615 = vpop.xlane.xlu0 %614
    %v616 = vsel %vm597, %v391, -inf
    %617 = vmax.xlane.f32.xlu0 %v616
    %v618 = vpop.xlane.xlu0 %617
    %v619 = vsel %vm597, %v394, -inf
    %620 = vmax.xlane.f32.xlu0 %v619
    %v621 = vpop.xlane.xlu0 %620
    %v622 = vsel %vm597, %v441, -inf
    %623 = vmax.xlane.f32.xlu0 %v622
    %v624 = vpop.xlane.xlu0 %623
    %v625 = vsel %vm597, %v444, -inf
    %626 = vmax.xlane.f32.xlu0 %v625
    %v627 = vpop.xlane.xlu0 %626
    %v628 = vsel %vm597, %v491, -inf
    %629 = vmax.xlane.f32.xlu0 %v628
    %v630 = vpop.xlane.xlu0 %629
    %v631 = vsel %vm597, %v494, -inf
    %632 = vmax.xlane.f32.xlu0 %v631
    %v633 = vpop.xlane.xlu0 %632
    %v634 = vsel %vm597, %v541, -inf
    %635 = vmax.xlane.f32.xlu0 %v634
    %v636 = vpop.xlane.xlu0 %635
    %v637 = vsel %vm597, %v544, -inf
    %638 = vmax.xlane.f32.xlu0 %v637
    %v639 = vpop.xlane.xlu0 %638
    %v640 = vsel %vm597, %v591, -inf
    %641 = vmax.xlane.f32.xlu0 %v640
    %v642 = vpop.xlane.xlu0 %641
    %v643 = vsel %vm597, %v594, -inf
    %644 = vmax.xlane.f32.xlu0 %v643
    %v645 = vpop.xlane.xlu0 %644
    %v646 = vsub.f32 %v241, %v600
    %v647 = vsub.f32 %v244, %v603
    %v648 = vsub.f32 %v291, %v606
    %v649 = vsub.f32 %v294, %v609
    %v650 = vsub.f32 %v341, %v612
    %v651 = vsub.f32 %v344, %v615
    %v652 = vsub.f32 %v391, %v618
    %v653 = vsub.f32 %v394, %v621
    %v654 = vsub.f32 %v441, %v624
    %v655 = vsub.f32 %v444, %v627
    %v656 = vsub.f32 %v491, %v630
    %v657 = vsub.f32 %v494, %v633
    %v658 = vsub.f32 %v541, %v636
    %v659 = vsub.f32 %v544, %v639
    %v660 = vsub.f32 %v591, %v642
    %v661 = vsub.f32 %v594, %v645
    %v662 = vmul.f32 %v646, 1.442695
    %v663 = vpow.pop %v662
    %v664 = vmul.f32 %v647, 1.442695
    %v665 = vpow.pop %v664
    %v666 = vmul.f32 %v648, 1.442695
    %v667 = vpow.pop %v666
    %v668 = vmul.f32 %v649, 1.442695
    %v669 = vpow.pop %v668
    %v670 = vmul.f32 %v650, 1.442695
    %v671 = vpow.pop %v670
    %v672 = vmul.f32 %v651, 1.442695
    %v673 = vpow.pop %v672
    %v674 = vmul.f32 %v652, 1.442695
    %v675 = vpow.pop %v674
    %v676 = vmul.f32 %v653, 1.442695
    %v677 = vpow.pop %v676
    %v678 = vmul.f32 %v654, 1.442695
    %v679 = vpow.pop %v678
    %v680 = vmul.f32 %v655, 1.442695
    %v681 = vpow.pop %v680
    %v682 = vmul.f32 %v656, 1.442695
    %v683 = vpow.pop %v682
    %v684 = vmul.f32 %v657, 1.442695
    %v685 = vpow.pop %v684
    %v686 = vmul.f32 %v658, 1.442695
    %v687 = vpow.pop %v686
    %v688 = vmul.f32 %v659, 1.442695
    %v689 = vpow.pop %v688
    %v690 = vmul.f32 %v660, 1.442695
    %v691 = vpow.pop %v690
    %v692 = vmul.f32 %v661, 1.442695
    %v693 = vpow.pop %v692
    %v694 = vsel %vm597, %v663, 0.0
    %695 = vadd.xlane.f32.xlu0 %v694
    %v696 = vpop.xlane.xlu0 %695
    %v697 = vsel %vm597, %v665, 0.0
    %698 = vadd.xlane.f32.xlu0 %v697
    %v699 = vpop.xlane.xlu0 %698
    %v700 = vsel %vm597, %v667, 0.0
    %701 = vadd.xlane.f32.xlu0 %v700
    %v702 = vpop.xlane.xlu0 %701
    %v703 = vsel %vm597, %v669, 0.0
    %704 = vadd.xlane.f32.xlu0 %v703
    %v705 = vpop.xlane.xlu0 %704
    %v706 = vsel %vm597, %v671, 0.0
    %707 = vadd.xlane.f32.xlu0 %v706
    %v708 = vpop.xlane.xlu0 %707
    %v709 = vsel %vm597, %v673, 0.0
    %710 = vadd.xlane.f32.xlu0 %v709
    %v711 = vpop.xlane.xlu0 %710
    %v712 = vsel %vm597, %v675, 0.0
    %713 = vadd.xlane.f32.xlu0 %v712
    %v714 = vpop.xlane.xlu0 %713
    %v715 = vsel %vm597, %v677, 0.0
    %716 = vadd.xlane.f32.xlu0 %v715
    %v717 = vpop.xlane.xlu0 %716
    %v718 = vsel %vm597, %v679, 0.0
    %719 = vadd.xlane.f32.xlu0 %v718
    %v720 = vpop.xlane.xlu0 %719
    %v721 = vsel %vm597, %v681, 0.0
    %722 = vadd.xlane.f32.xlu0 %v721
    %v723 = vpop.xlane.xlu0 %722
    %v724 = vsel %vm597, %v683, 0.0
    %725 = vadd.xlane.f32.xlu0 %v724
    %v726 = vpop.xlane.xlu0 %725
    %v727 = vsel %vm597, %v685, 0.0
    %728 = vadd.xlane.f32.xlu0 %v727
    %v729 = vpop.xlane.xlu0 %728
    %v730 = vsel %vm597, %v687, 0.0
    %731 = vadd.xlane.f32.xlu0 %v730
    %v732 = vpop.xlane.xlu0 %731
    %v733 = vsel %vm597, %v689, 0.0
    %734 = vadd.xlane.f32.xlu0 %v733
    %v735 = vpop.xlane.xlu0 %734
    %v736 = vsel %vm597, %v691, 0.0
    %737 = vadd.xlane.f32.xlu0 %v736
    %v738 = vpop.xlane.xlu0 %737
    %v739 = vsel %vm597, %v693, 0.0
    %740 = vadd.xlane.f32.xlu0 %v739
    %v741 = vpop.xlane.xlu0 %740
    %v742 = vrcp.pop %v696
    %v743 = vrcp.pop %v699
    %v744 = vrcp.pop %v702
    %v745 = vrcp.pop %v705
    %v746 = vrcp.pop %v708
    %v747 = vrcp.pop %v711
    %v748 = vrcp.pop %v714
    %v749 = vrcp.pop %v717
    %v750 = vrcp.pop %v720
    %v751 = vrcp.pop %v723
    %v752 = vrcp.pop %v726
    %v753 = vrcp.pop %v729
    %v754 = vrcp.pop %v732
    %v755 = vrcp.pop %v735
    %v756 = vrcp.pop %v738
    %v757 = vrcp.pop %v741
    %v758 = vmul.f32 %v663, %v742
    %v759 = vmul.f32 %v665, %v743
    %v760 = vmul.f32 %v667, %v744
    %v761 = vmul.f32 %v669, %v745
    %v762 = vmul.f32 %v671, %v746
    %v763 = vmul.f32 %v673, %v747
    %v764 = vmul.f32 %v675, %v748
    %v765 = vmul.f32 %v677, %v749
    %v766 = vmul.f32 %v679, %v750
    %v767 = vmul.f32 %v681, %v751
    %v768 = vmul.f32 %v683, %v752
    %v769 = vmul.f32 %v685, %v753
    %v770 = vmul.f32 %v687, %v754
    %v771 = vmul.f32 %v689, %v755
    %v772 = vmul.f32 %v691, %v756
    %v773 = vmul.f32 %v693, %v757
    %v774 = vpack.c.bf16 %v759, %v758
    %v775 = vpack.c.bf16 %v761, %v760
    %v776 = vpack.c.bf16 %v763, %v762
    %v777 = vpack.c.bf16 %v765, %v764
    %v778 = vpack.c.bf16 %v767, %v766
    %v779 = vpack.c.bf16 %v769, %v768
    %v780 = vpack.c.bf16 %v771, %v770
    %v781 = vpack.c.bf16 %v773, %v772
    %782 = vrot.lane.b32.xlu0 %v188, 64
    %v783 = vpop.permute.xlu0 %782
    %v786 = vsel %vm597, %v774, 0
    %788 = vmatprep.subr.bf16.mxu0 0
    %789 = vmatpush1.bf16.msra.mxu0 0
    %790 = vmatprep.subr.bf16.mxu0 0
    %791 = vmatpush1.bf16.msra.mxu0 0
    %792 = vmatprep.subr.bf16.mxu0 0
    %793 = vmatpush1.bf16.msra.mxu0 0
    %794 = vmatprep.subr.bf16.mxu0 0
    %795 = vmatpush1.bf16.msra.mxu0 0
    %796 = vmatprep.subr.bf16.mxu0 0
    %797 = vmatpush1.bf16.msra.mxu0 0
    %798 = vmatprep.subr.bf16.mxu0 0
    %799 = vmatpush1.bf16.msra.mxu0 0
    %800 = vmatprep.subr.bf16.mxu0 0
    %801 = vmatpush1.bf16.msra.mxu0 0
    %802 = vmatprep.subr.bf16.mxu0 0
    %803 = vmatpush1.bf16.msra.mxu0 %v783
    %804 = vmatprep.subr.bf16.mxu0 0
    %805 = vmatpush2.bf16.msra.mxu0 0
    %806 = vmatprep.subr.bf16.mxu0 0
    %807 = vmatpush2.bf16.msra.mxu0 0
    %808 = vmatprep.subr.bf16.mxu0 0
    %809 = vmatpush2.bf16.msra.mxu0 0
    %810 = vmatprep.subr.bf16.mxu0 0
    %811 = vmatpush2.bf16.msra.mxu0 0
    %812 = vmatprep.subr.bf16.mxu0 0
    %813 = vmatpush2.bf16.msra.mxu0 0
    %814 = vmatprep.subr.bf16.mxu0 0
    %815 = vmatpush2.bf16.msra.mxu0 0
    %816 = vmatprep.subr.bf16.mxu0 0
    %817 = vmatpush2.bf16.msra.mxu0 0
    %818 = vmatprep.subr.bf16.mxu0 0
    %819 = vmatpush2.bf16.msra.mxu0 0
    %820 = vmatprep.mubr.bf16.mxu0 0
    %821 = vmatmul.mubr.bf16.gmra.mxu0 %v786
    %v822 = vpop.f32.mrf.mxu0
    %v823 = vadd.f32 0.0, %v822
    %v824 = vpop.f32.mrf.mxu0
    %v825 = vpop.f32.mrf.mxu0
    %v826 = vadd.f32 0.0, %v825
    %v827 = vpop.f32.mrf.mxu0
    %828 = vdwg.mxu0
    %829 = vrot.lane.b32.xlu0 %v189, 64
    %v830 = vpop.permute.xlu0 %829
    %v833 = vsel %vm597, %v775, 0
    %835 = vmatprep.subr.bf16.mxu0 0
    %836 = vmatpush1.bf16.msra.mxu0 0
    %837 = vmatprep.subr.bf16.mxu0 0
    %838 = vmatpush1.bf16.msra.mxu0 0
    %839 = vmatprep.subr.bf16.mxu0 0
    %840 = vmatpush1.bf16.msra.mxu0 0
    %841 = vmatprep.subr.bf16.mxu0 0
    %842 = vmatpush1.bf16.msra.mxu0 0
    %843 = vmatprep.subr.bf16.mxu0 0
    %844 = vmatpush1.bf16.msra.mxu0 0
    %845 = vmatprep.subr.bf16.mxu0 0
    %846 = vmatpush1.bf16.msra.mxu0 0
    %847 = vmatprep.subr.bf16.mxu0 0
    %848 = vmatpush1.bf16.msra.mxu0 0
    %849 = vmatprep.subr.bf16.mxu0 0
    %850 = vmatpush1.bf16.msra.mxu0 %v830
    %851 = vmatprep.subr.bf16.mxu0 0
    %852 = vmatpush2.bf16.msra.mxu0 0
    %853 = vmatprep.subr.bf16.mxu0 0
    %854 = vmatpush2.bf16.msra.mxu0 0
    %855 = vmatprep.subr.bf16.mxu0 0
    %856 = vmatpush2.bf16.msra.mxu0 0
    %857 = vmatprep.subr.bf16.mxu0 0
    %858 = vmatpush2.bf16.msra.mxu0 0
    %859 = vmatprep.subr.bf16.mxu0 0
    %860 = vmatpush2.bf16.msra.mxu0 0
    %861 = vmatprep.subr.bf16.mxu0 0
    %862 = vmatpush2.bf16.msra.mxu0 0
    %863 = vmatprep.subr.bf16.mxu0 0
    %864 = vmatpush2.bf16.msra.mxu0 0
    %865 = vmatprep.subr.bf16.mxu0 0
    %866 = vmatpush2.bf16.msra.mxu0 0
    %867 = vmatprep.mubr.bf16.mxu0 0
    %868 = vmatmul.mubr.bf16.gmra.mxu0 %v833
    %v869 = vpop.f32.mrf.mxu0
    %v870 = vadd.f32 0.0, %v869
    %v871 = vpop.f32.mrf.mxu0
    %v872 = vpop.f32.mrf.mxu0
    %v873 = vadd.f32 0.0, %v872
    %v874 = vpop.f32.mrf.mxu0
    %875 = vdwg.mxu0
    %876 = vrot.lane.b32.xlu0 %v190, 64
    %v877 = vpop.permute.xlu0 %876
    %v880 = vsel %vm597, %v776, 0
    %882 = vmatprep.subr.bf16.mxu0 0
    %883 = vmatpush1.bf16.msra.mxu0 0
    %884 = vmatprep.subr.bf16.mxu0 0
    %885 = vmatpush1.bf16.msra.mxu0 0
    %886 = vmatprep.subr.bf16.mxu0 0
    %887 = vmatpush1.bf16.msra.mxu0 0
    %888 = vmatprep.subr.bf16.mxu0 0
    %889 = vmatpush1.bf16.msra.mxu0 0
    %890 = vmatprep.subr.bf16.mxu0 0
    %891 = vmatpush1.bf16.msra.mxu0 0
    %892 = vmatprep.subr.bf16.mxu0 0
    %893 = vmatpush1.bf16.msra.mxu0 0
    %894 = vmatprep.subr.bf16.mxu0 0
    %895 = vmatpush1.bf16.msra.mxu0 0
    %896 = vmatprep.subr.bf16.mxu0 0
    %897 = vmatpush1.bf16.msra.mxu0 %v877
    %898 = vmatprep.subr.bf16.mxu0 0
    %899 = vmatpush2.bf16.msra.mxu0 0
    %900 = vmatprep.subr.bf16.mxu0 0
    %901 = vmatpush2.bf16.msra.mxu0 0
    %902 = vmatprep.subr.bf16.mxu0 0
    %903 = vmatpush2.bf16.msra.mxu0 0
    %904 = vmatprep.subr.bf16.mxu0 0
    %905 = vmatpush2.bf16.msra.mxu0 0
    %906 = vmatprep.subr.bf16.mxu0 0
    %907 = vmatpush2.bf16.msra.mxu0 0
    %908 = vmatprep.subr.bf16.mxu0 0
    %909 = vmatpush2.bf16.msra.mxu0 0
    %910 = vmatprep.subr.bf16.mxu0 0
    %911 = vmatpush2.bf16.msra.mxu0 0
    %912 = vmatprep.subr.bf16.mxu0 0
    %913 = vmatpush2.bf16.msra.mxu0 0
    %914 = vmatprep.mubr.bf16.mxu0 0
    %915 = vmatmul.mubr.bf16.gmra.mxu0 %v880
    %v916 = vpop.f32.mrf.mxu0
    %v917 = vadd.f32 0.0, %v916
    %v918 = vpop.f32.mrf.mxu0
    %v919 = vpop.f32.mrf.mxu0
    %v920 = vadd.f32 0.0, %v919
    %v921 = vpop.f32.mrf.mxu0
    %922 = vdwg.mxu0
    %923 = vrot.lane.b32.xlu0 %v191, 64
    %v924 = vpop.permute.xlu0 %923
    %v927 = vsel %vm597, %v777, 0
    %929 = vmatprep.subr.bf16.mxu0 0
    %930 = vmatpush1.bf16.msra.mxu0 0
    %931 = vmatprep.subr.bf16.mxu0 0
    %932 = vmatpush1.bf16.msra.mxu0 0
    %933 = vmatprep.subr.bf16.mxu0 0
    %934 = vmatpush1.bf16.msra.mxu0 0
    %935 = vmatprep.subr.bf16.mxu0 0
    %936 = vmatpush1.bf16.msra.mxu0 0
    %937 = vmatprep.subr.bf16.mxu0 0
    %938 = vmatpush1.bf16.msra.mxu0 0
    %939 = vmatprep.subr.bf16.mxu0 0
    %940 = vmatpush1.bf16.msra.mxu0 0
    %941 = vmatprep.subr.bf16.mxu0 0
    %942 = vmatpush1.bf16.msra.mxu0 0
    %943 = vmatprep.subr.bf16.mxu0 0
    %944 = vmatpush1.bf16.msra.mxu0 %v924
    %945 = vmatprep.subr.bf16.mxu0 0
    %946 = vmatpush2.bf16.msra.mxu0 0
    %947 = vmatprep.subr.bf16.mxu0 0
    %948 = vmatpush2.bf16.msra.mxu0 0
    %949 = vmatprep.subr.bf16.mxu0 0
    %950 = vmatpush2.bf16.msra.mxu0 0
    %951 = vmatprep.subr.bf16.mxu0 0
    %952 = vmatpush2.bf16.msra.mxu0 0
    %953 = vmatprep.subr.bf16.mxu0 0
    %954 = vmatpush2.bf16.msra.mxu0 0
    %955 = vmatprep.subr.bf16.mxu0 0
    %956 = vmatpush2.bf16.msra.mxu0 0
    %957 = vmatprep.subr.bf16.mxu0 0
    %958 = vmatpush2.bf16.msra.mxu0 0
    %959 = vmatprep.subr.bf16.mxu0 0
    %960 = vmatpush2.bf16.msra.mxu0 0
    %961 = vmatprep.mubr.bf16.mxu0 0
    %962 = vmatmul.mubr.bf16.gmra.mxu0 %v927
    %v963 = vpop.f32.mrf.mxu0
    %v964 = vadd.f32 0.0, %v963
    %v965 = vpop.f32.mrf.mxu0
    %v966 = vpop.f32.mrf.mxu0
    %v967 = vadd.f32 0.0, %v966
    %v968 = vpop.f32.mrf.mxu0
    %969 = vdwg.mxu0
    %970 = vrot.lane.b32.xlu0 %v192, 64
    %v971 = vpop.permute.xlu0 %970
    %v974 = vsel %vm597, %v778, 0
    %976 = vmatprep.subr.bf16.mxu0 0
    %977 = vmatpush1.bf16.msra.mxu0 0
    %978 = vmatprep.subr.bf16.mxu0 0
    %979 = vmatpush1.bf16.msra.mxu0 0
    %980 = vmatprep.subr.bf16.mxu0 0
    %981 = vmatpush1.bf16.msra.mxu0 0
    %982 = vmatprep.subr.bf16.mxu0 0
    %983 = vmatpush1.bf16.msra.mxu0 0
    %984 = vmatprep.subr.bf16.mxu0 0
    %985 = vmatpush1.bf16.msra.mxu0 0
    %986 = vmatprep.subr.bf16.mxu0 0
    %987 = vmatpush1.bf16.msra.mxu0 0
    %988 = vmatprep.subr.bf16.mxu0 0
    %989 = vmatpush1.bf16.msra.mxu0 0
    %990 = vmatprep.subr.bf16.mxu0 0
    %991 = vmatpush1.bf16.msra.mxu0 %v971
    %992 = vmatprep.subr.bf16.mxu0 0
    %993 = vmatpush2.bf16.msra.mxu0 0
    %994 = vmatprep.subr.bf16.mxu0 0
    %995 = vmatpush2.bf16.msra.mxu0 0
    %996 = vmatprep.subr.bf16.mxu0 0
    %997 = vmatpush2.bf16.msra.mxu0 0
    %998 = vmatprep.subr.bf16.mxu0 0
    %999 = vmatpush2.bf16.msra.mxu0 0
    %1000 = vmatprep.subr.bf16.mxu0 0
    %1001 = vmatpush2.bf16.msra.mxu0 0
    %1002 = vmatprep.subr.bf16.mxu0 0
    %1003 = vmatpush2.bf16.msra.mxu0 0
    %1004 = vmatprep.subr.bf16.mxu0 0
    %1005 = vmatpush2.bf16.msra.mxu0 0
    %1006 = vmatprep.subr.bf16.mxu0 0
    %1007 = vmatpush2.bf16.msra.mxu0 0
    %1008 = vmatprep.mubr.bf16.mxu0 0
    %1009 = vmatmul.mubr.bf16.gmra.mxu0 %v974
    %v1010 = vpop.f32.mrf.mxu0
    %v1011 = vadd.f32 0.0, %v1010
    %v1012 = vpop.f32.mrf.mxu0
    %v1013 = vpop.f32.mrf.mxu0
    %v1014 = vadd.f32 0.0, %v1013
    %v1015 = vpop.f32.mrf.mxu0
    %1016 = vdwg.mxu0
    %1017 = vrot.lane.b32.xlu0 %v193, 64
    %v1018 = vpop.permute.xlu0 %1017
    %v1021 = vsel %vm597, %v779, 0
    %1023 = vmatprep.subr.bf16.mxu0 0
    %1024 = vmatpush1.bf16.msra.mxu0 0
    %1025 = vmatprep.subr.bf16.mxu0 0
    %1026 = vmatpush1.bf16.msra.mxu0 0
    %1027 = vmatprep.subr.bf16.mxu0 0
    %1028 = vmatpush1.bf16.msra.mxu0 0
    %1029 = vmatprep.subr.bf16.mxu0 0
    %1030 = vmatpush1.bf16.msra.mxu0 0
    %1031 = vmatprep.subr.bf16.mxu0 0
    %1032 = vmatpush1.bf16.msra.mxu0 0
    %1033 = vmatprep.subr.bf16.mxu0 0
    %1034 = vmatpush1.bf16.msra.mxu0 0
    %1035 = vmatprep.subr.bf16.mxu0 0
    %1036 = vmatpush1.bf16.msra.mxu0 0
    %1037 = vmatprep.subr.bf16.mxu0 0
    %1038 = vmatpush1.bf16.msra.mxu0 %v1018
    %1039 = vmatprep.subr.bf16.mxu0 0
    %1040 = vmatpush2.bf16.msra.mxu0 0
    %1041 = vmatprep.subr.bf16.mxu0 0
    %1042 = vmatpush2.bf16.msra.mxu0 0
    %1043 = vmatprep.subr.bf16.mxu0 0
    %1044 = vmatpush2.bf16.msra.mxu0 0
    %1045 = vmatprep.subr.bf16.mxu0 0
    %1046 = vmatpush2.bf16.msra.mxu0 0
    %1047 = vmatprep.subr.bf16.mxu0 0
    %1048 = vmatpush2.bf16.msra.mxu0 0
    %1049 = vmatprep.subr.bf16.mxu0 0
    %1050 = vmatpush2.bf16.msra.mxu0 0
    %1051 = vmatprep.subr.bf16.mxu0 0
    %1052 = vmatpush2.bf16.msra.mxu0 0
    %1053 = vmatprep.subr.bf16.mxu0 0
    %1054 = vmatpush2.bf16.msra.mxu0 0
    %1055 = vmatprep.mubr.bf16.mxu0 0
    %1056 = vmatmul.mubr.bf16.gmra.mxu0 %v1021
    %v1057 = vpop.f32.mrf.mxu0
    %v1058 = vadd.f32 0.0, %v1057
    %v1059 = vpop.f32.mrf.mxu0
    %v1060 = vpop.f32.mrf.mxu0
    %v1061 = vadd.f32 0.0, %v1060
    %v1062 = vpop.f32.mrf.mxu0
    %1063 = vdwg.mxu0
    %1064 = vrot.lane.b32.xlu0 %v194, 64
    %v1065 = vpop.permute.xlu0 %1064
    %v1068 = vsel %vm597, %v780, 0
    %1070 = vmatprep.subr.bf16.mxu0 0
    %1071 = vmatpush1.bf16.msra.mxu0 0
    %1072 = vmatprep.subr.bf16.mxu0 0
    %1073 = vmatpush1.bf16.msra.mxu0 0
    %1074 = vmatprep.subr.bf16.mxu0 0
    %1075 = vmatpush1.bf16.msra.mxu0 0
    %1076 = vmatprep.subr.bf16.mxu0 0
    %1077 = vmatpush1.bf16.msra.mxu0 0
    %1078 = vmatprep.subr.bf16.mxu0 0
    %1079 = vmatpush1.bf16.msra.mxu0 0
    %1080 = vmatprep.subr.bf16.mxu0 0
    %1081 = vmatpush1.bf16.msra.mxu0 0
    %1082 = vmatprep.subr.bf16.mxu0 0
    %1083 = vmatpush1.bf16.msra.mxu0 0
    %1084 = vmatprep.subr.bf16.mxu0 0
    %1085 = vmatpush1.bf16.msra.mxu0 %v1065
    %1086 = vmatprep.subr.bf16.mxu0 0
    %1087 = vmatpush2.bf16.msra.mxu0 0
    %1088 = vmatprep.subr.bf16.mxu0 0
    %1089 = vmatpush2.bf16.msra.mxu0 0
    %1090 = vmatprep.subr.bf16.mxu0 0
    %1091 = vmatpush2.bf16.msra.mxu0 0
    %1092 = vmatprep.subr.bf16.mxu0 0
    %1093 = vmatpush2.bf16.msra.mxu0 0
    %1094 = vmatprep.subr.bf16.mxu0 0
    %1095 = vmatpush2.bf16.msra.mxu0 0
    %1096 = vmatprep.subr.bf16.mxu0 0
    %1097 = vmatpush2.bf16.msra.mxu0 0
    %1098 = vmatprep.subr.bf16.mxu0 0
    %1099 = vmatpush2.bf16.msra.mxu0 0
    %1100 = vmatprep.subr.bf16.mxu0 0
    %1101 = vmatpush2.bf16.msra.mxu0 0
    %1102 = vmatprep.mubr.bf16.mxu0 0
    %1103 = vmatmul.mubr.bf16.gmra.mxu0 %v1068
    %v1104 = vpop.f32.mrf.mxu0
    %v1105 = vadd.f32 0.0, %v1104
    %v1106 = vpop.f32.mrf.mxu0
    %v1107 = vpop.f32.mrf.mxu0
    %v1108 = vadd.f32 0.0, %v1107
    %v1109 = vpop.f32.mrf.mxu0
    %1110 = vdwg.mxu0
    %1111 = vrot.lane.b32.xlu0 %v195, 64
    %v1112 = vpop.permute.xlu0 %1111
    %v1115 = vsel %vm597, %v781, 0
    %1117 = vmatprep.subr.bf16.mxu0 0
    %1118 = vmatpush1.bf16.msra.mxu0 0
    %1119 = vmatprep.subr.bf16.mxu0 0
    %1120 = vmatpush1.bf16.msra.mxu0 0
    %1121 = vmatprep.subr.bf16.mxu0 0
    %1122 = vmatpush1.bf16.msra.mxu0 0
    %1123 = vmatprep.subr.bf16.mxu0 0
    %1124 = vmatpush1.bf16.msra.mxu0 0
    %1125 = vmatprep.subr.bf16.mxu0 0
    %1126 = vmatpush1.bf16.msra.mxu0 0
    %1127 = vmatprep.subr.bf16.mxu0 0
    %1128 = vmatpush1.bf16.msra.mxu0 0
    %1129 = vmatprep.subr.bf16.mxu0 0
    %1130 = vmatpush1.bf16.msra.mxu0 0
    %1131 = vmatprep.subr.bf16.mxu0 0
    %1132 = vmatpush1.bf16.msra.mxu0 %v1112
    %1133 = vmatprep.subr.bf16.mxu0 0
    %1134 = vmatpush2.bf16.msra.mxu0 0
    %1135 = vmatprep.subr.bf16.mxu0 0
    %1136 = vmatpush2.bf16.msra.mxu0 0
    %1137 = vmatprep.subr.bf16.mxu0 0
    %1138 = vmatpush2.bf16.msra.mxu0 0
    %1139 = vmatprep.subr.bf16.mxu0 0
    %1140 = vmatpush2.bf16.msra.mxu0 0
    %1141 = vmatprep.subr.bf16.mxu0 0
    %1142 = vmatpush2.bf16.msra.mxu0 0
    %1143 = vmatprep.subr.bf16.mxu0 0
    %1144 = vmatpush2.bf16.msra.mxu0 0
    %1145 = vmatprep.subr.bf16.mxu0 0
    %1146 = vmatpush2.bf16.msra.mxu0 0
    %1147 = vmatprep.subr.bf16.mxu0 0
    %1148 = vmatpush2.bf16.msra.mxu0 0
    %1149 = vmatprep.mubr.bf16.mxu0 0
    %1150 = vmatmul.mubr.bf16.gmra.mxu0 %v1115
    %v1151 = vpop.f32.mrf.mxu0
    %v1152 = vadd.f32 0.0, %v1151
    %v1153 = vpop.f32.mrf.mxu0
    %v1154 = vpop.f32.mrf.mxu0
    %v1155 = vadd.f32 0.0, %v1154
    %v1156 = vpop.f32.mrf.mxu0
    %1157 = vdwg.mxu0
    %v1158 = vpack.c.bf16 %v826, %v823
    %v1159 = vpack.c.bf16 %v873, %v870
    %v1160 = vld [vmem:[#allocation7] sm:$0xf]
    %v1161 = vpack.c.bf16 %v920, %v917
    %v1162 = vpack.c.bf16 %v967, %v964
    %s1163 = scalar_lea.vmem [#allocation7], 4
    %v1164 = vld [vmem:[%s1163] sm:$0xf]
    %v1166 = vsel %vm199, %v1161, 0
    %v1169 = vsel %vm199, %v1162, 0
    %vm1171 = vcmask 1043456
    %v1173 = vsel %vm1171, %v1164, 0
    %1175 = vmatprep.subr.bf16.mxu0 0
    %1176 = vmatpush1.bf16.msra.mxu0 0
    %1177 = vmatprep.subr.bf16.mxu0 0
    %1178 = vmatpush1.bf16.msra.mxu0 0
    %1179 = vmatprep.subr.bf16.mxu0 0
    %1180 = vmatpush1.bf16.msra.mxu0 0
    %1181 = vmatprep.subr.bf16.mxu0 0
    %1182 = vmatpush1.bf16.msra.mxu0 0
    %1183 = vmatprep.subr.bf16.mxu0 0
    %1184 = vmatpush1.bf16.msra.mxu0 0
    %1185 = vmatprep.subr.bf16.mxu0 0
    %1186 = vmatpush1.bf16.msra.mxu0 0
    %1187 = vmatprep.subr.bf16.mxu0 0
    %1188 = vmatpush1.bf16.msra.mxu0 0
    %1189 = vmatprep.subr.bf16.mxu0 0
    %1190 = vmatpush1.bf16.msra.mxu0 %v1173
    %1191 = vmatprep.subr.bf16.mxu0 0
    %1192 = vmatpush2.bf16.msra.mxu0 0
    %1193 = vmatprep.subr.bf16.mxu0 0
    %1194 = vmatpush2.bf16.msra.mxu0 0
    %1195 = vmatprep.subr.bf16.mxu0 0
    %1196 = vmatpush2.bf16.msra.mxu0 0
    %1197 = vmatprep.subr.bf16.mxu0 0
    %1198 = vmatpush2.bf16.msra.mxu0 0
    %1199 = vmatprep.subr.bf16.mxu0 0
    %1200 = vmatpush2.bf16.msra.mxu0 0
    %1201 = vmatprep.subr.bf16.mxu0 0
    %1202 = vmatpush2.bf16.msra.mxu0 0
    %1203 = vmatprep.subr.bf16.mxu0 0
    %1204 = vmatpush2.bf16.msra.mxu0 0
    %1205 = vmatprep.subr.bf16.mxu0 0
    %1206 = vmatpush2.bf16.msra.mxu0 0
    %1207 = vmatprep.mubr.bf16.mxu0 0
    %1208 = vmatmul.mubr.bf16.gmra.mxu0 %v1166
    %v1209 = vpop.f32.mrf.mxu0
    %v1210 = vadd.f32 0.0, %v1209
    %v1211 = vpop.f32.mrf.mxu0
    %v1212 = vpop.f32.mrf.mxu0
    %v1213 = vadd.f32 0.0, %v1212
    %v1214 = vpop.f32.mrf.mxu0
    %1215 = vmatprep.mubr.bf16.mxu0 0
    %1216 = vmatmul.mubr.bf16.gmra.mxu0 %v1169
    %v1217 = vpop.f32.mrf.mxu0
    %v1218 = vadd.f32 0.0, %v1217
    %v1219 = vpop.f32.mrf.mxu0
    %v1220 = vpop.f32.mrf.mxu0
    %v1221 = vadd.f32 0.0, %v1220
    %v1222 = vpop.f32.mrf.mxu0
    %1223 = vdwg.mxu0
    %v1225 = vsel %vm199, %v1158, 0
    %v1228 = vsel %vm199, %v1159, 0
    %v1231 = vsel %vm1171, %v1160, 0
    %1233 = vmatprep.subr.bf16.mxu0 0
    %1234 = vmatpush1.bf16.msra.mxu0 0
    %1235 = vmatprep.subr.bf16.mxu0 0
    %1236 = vmatpush1.bf16.msra.mxu0 0
    %1237 = vmatprep.subr.bf16.mxu0 0
    %1238 = vmatpush1.bf16.msra.mxu0 0
    %1239 = vmatprep.subr.bf16.mxu0 0
    %1240 = vmatpush1.bf16.msra.mxu0 0
    %1241 = vmatprep.subr.bf16.mxu0 0
    %1242 = vmatpush1.bf16.msra.mxu0 0
    %1243 = vmatprep.subr.bf16.mxu0 0
    %1244 = vmatpush1.bf16.msra.mxu0 0
    %1245 = vmatprep.subr.bf16.mxu0 0
    %1246 = vmatpush1.bf16.msra.mxu0 0
    %1247 = vmatprep.subr.bf16.mxu0 0
    %1248 = vmatpush1.bf16.msra.mxu0 %v1231
    %1249 = vmatprep.subr.bf16.mxu0 0
    %1250 = vmatpush2.bf16.msra.mxu0 0
    %1251 = vmatprep.subr.bf16.mxu0 0
    %1252 = vmatpush2.bf16.msra.mxu0 0
    %1253 = vmatprep.subr.bf16.mxu0 0
    %1254 = vmatpush2.bf16.msra.mxu0 0
    %1255 = vmatprep.subr.bf16.mxu0 0
    %1256 = vmatpush2.bf16.msra.mxu0 0
    %1257 = vmatprep.subr.bf16.mxu0 0
    %1258 = vmatpush2.bf16.msra.mxu0 0
    %1259 = vmatprep.subr.bf16.mxu0 0
    %1260 = vmatpush2.bf16.msra.mxu0 0
    %1261 = vmatprep.subr.bf16.mxu0 0
    %1262 = vmatpush2.bf16.msra.mxu0 0
    %1263 = vmatprep.subr.bf16.mxu0 0
    %1264 = vmatpush2.bf16.msra.mxu0 0
    %1265 = vmatprep.mubr.bf16.mxu0 0
    %1266 = vmatmul.mubr.bf16.gmra.mxu0 %v1225
    %v1267 = vpop.f32.mrf.mxu0
    %v1268 = vadd.f32 %v1210, %v1267
    %v1269 = vpop.f32.mrf.mxu0
    %v1270 = vpop.f32.mrf.mxu0
    %v1271 = vadd.f32 %v1213, %v1270
    %v1272 = vpop.f32.mrf.mxu0
    %1273 = vmatprep.mubr.bf16.mxu0 0
    %1274 = vmatmul.mubr.bf16.gmra.mxu0 %v1228
    %v1275 = vpop.f32.mrf.mxu0
    %v1276 = vadd.f32 %v1218, %v1275
    %v1277 = vpop.f32.mrf.mxu0
    %v1278 = vpop.f32.mrf.mxu0
    %v1279 = vadd.f32 %v1221, %v1278
    %v1280 = vpop.f32.mrf.mxu0
    %1281 = vdwg.mxu0
    %v1282 = vpack.c.bf16 %v1014, %v1011
    %v1283 = vpack.c.bf16 %v1061, %v1058
    %s1284 = scalar_lea.vmem [#allocation7], 8
    %v1285 = vld [vmem:[%s1284] sm:$0xf]
    %v1287 = vsel %vm199, %v1282, 0
    %v1290 = vsel %vm199, %v1283, 0
    %v1293 = vsel %vm1171, %v1285, 0
    %1295 = vmatprep.subr.bf16.mxu0 0
    %1296 = vmatpush1.bf16.msra.mxu0 0
    %1297 = vmatprep.subr.bf16.mxu0 0
    %1298 = vmatpush1.bf16.msra.mxu0 0
    %1299 = vmatprep.subr.bf16.mxu0 0
    %1300 = vmatpush1.bf16.msra.mxu0 0
    %1301 = vmatprep.subr.bf16.mxu0 0
    %1302 = vmatpush1.bf16.msra.mxu0 0
    %1303 = vmatprep.subr.bf16.mxu0 0
    %1304 = vmatpush1.bf16.msra.mxu0 0
    %1305 = vmatprep.subr.bf16.mxu0 0
    %1306 = vmatpush1.bf16.msra.mxu0 0
    %1307 = vmatprep.subr.bf16.mxu0 0
    %1308 = vmatpush1.bf16.msra.mxu0 0
    %1309 = vmatprep.subr.bf16.mxu0 0
    %1310 = vmatpush1.bf16.msra.mxu0 %v1293
    %1311 = vmatprep.subr.bf16.mxu0 0
    %1312 = vmatpush2.bf16.msra.mxu0 0
    %1313 = vmatprep.subr.bf16.mxu0 0
    %1314 = vmatpush2.bf16.msra.mxu0 0
    %1315 = vmatprep.subr.bf16.mxu0 0
    %1316 = vmatpush2.bf16.msra.mxu0 0
    %1317 = vmatprep.subr.bf16.mxu0 0
    %1318 = vmatpush2.bf16.msra.mxu0 0
    %1319 = vmatprep.subr.bf16.mxu0 0
    %1320 = vmatpush2.bf16.msra.mxu0 0
    %1321 = vmatprep.subr.bf16.mxu0 0
    %1322 = vmatpush2.bf16.msra.mxu0 0
    %1323 = vmatprep.subr.bf16.mxu0 0
    %1324 = vmatpush2.bf16.msra.mxu0 0
    %1325 = vmatprep.subr.bf16.mxu0 0
    %1326 = vmatpush2.bf16.msra.mxu0 0
    %1327 = vmatprep.mubr.bf16.mxu0 0
    %1328 = vmatmul.mubr.bf16.gmra.mxu0 %v1287
    %v1329 = vpop.f32.mrf.mxu0
    %v1330 = vadd.f32 0.0, %v1329
    %v1331 = vpop.f32.mrf.mxu0
    %v1332 = vpop.f32.mrf.mxu0
    %v1333 = vadd.f32 0.0, %v1332
    %v1334 = vpop.f32.mrf.mxu0
    %1335 = vmatprep.mubr.bf16.mxu0 0
    %1336 = vmatmul.mubr.bf16.gmra.mxu0 %v1290
    %v1337 = vpop.f32.mrf.mxu0
    %v1338 = vadd.f32 0.0, %v1337
    %v1339 = vpop.f32.mrf.mxu0
    %v1340 = vpop.f32.mrf.mxu0
    %v1341 = vadd.f32 0.0, %v1340
    %v1342 = vpop.f32.mrf.mxu0
    %1343 = vdwg.mxu0
    %v1344 = vadd.f32 %v1268, %v1330
    %v1345 = vadd.f32 %v1271, %v1333
    %v1346 = vadd.f32 %v1276, %v1338
    %v1347 = vadd.f32 %v1279, %v1341
    %v1348 = vpack.c.bf16 %v1108, %v1105
    %v1349 = vpack.c.bf16 %v1155, %v1152
    %s1350 = scalar_lea.vmem [#allocation7], 12
    %v1351 = vld [vmem:[%s1350] sm:$0xf]
    %v1353 = vsel %vm199, %v1348, 0
    %v1356 = vsel %vm199, %v1349, 0
    %v1359 = vsel %vm1171, %v1351, 0
    %1361 = vmatprep.subr.bf16.mxu0 0
    %1362 = vmatpush1.bf16.msra.mxu0 0
    %1363 = vmatprep.subr.bf16.mxu0 0
    %1364 = vmatpush1.bf16.msra.mxu0 0
    %1365 = vmatprep.subr.bf16.mxu0 0
    %1366 = vmatpush1.bf16.msra.mxu0 0
    %1367 = vmatprep.subr.bf16.mxu0 0
    %1368 = vmatpush1.bf16.msra.mxu0 0
    %1369 = vmatprep.subr.bf16.mxu0 0
    %1370 = vmatpush1.bf16.msra.mxu0 0
    %1371 = vmatprep.subr.bf16.mxu0 0
    %1372 = vmatpush1.bf16.msra.mxu0 0
    %1373 = vmatprep.subr.bf16.mxu0 0
    %1374 = vmatpush1.bf16.msra.mxu0 0
    %1375 = vmatprep.subr.bf16.mxu0 0
    %1376 = vmatpush1.bf16.msra.mxu0 %v1359
    %1377 = vmatprep.subr.bf16.mxu0 0
    %1378 = vmatpush2.bf16.msra.mxu0 0
    %1379 = vmatprep.subr.bf16.mxu0 0
    %1380 = vmatpush2.bf16.msra.mxu0 0
    %1381 = vmatprep.subr.bf16.mxu0 0
    %1382 = vmatpush2.bf16.msra.mxu0 0
    %1383 = vmatprep.subr.bf16.mxu0 0
    %1384 = vmatpush2.bf16.msra.mxu0 0
    %1385 = vmatprep.subr.bf16.mxu0 0
    %1386 = vmatpush2.bf16.msra.mxu0 0
    %1387 = vmatprep.subr.bf16.mxu0 0
    %1388 = vmatpush2.bf16.msra.mxu0 0
    %1389 = vmatprep.subr.bf16.mxu0 0
    %1390 = vmatpush2.bf16.msra.mxu0 0
    %1391 = vmatprep.subr.bf16.mxu0 0
    %1392 = vmatpush2.bf16.msra.mxu0 0
    %1393 = vmatprep.mubr.bf16.mxu0 0
    %1394 = vmatmul.mubr.bf16.gmra.mxu0 %v1353
    %v1395 = vpop.f32.mrf.mxu0
    %v1396 = vadd.f32 0.0, %v1395
    %v1397 = vpop.f32.mrf.mxu0
    %v1398 = vpop.f32.mrf.mxu0
    %v1399 = vadd.f32 0.0, %v1398
    %v1400 = vpop.f32.mrf.mxu0
    %1401 = vmatprep.mubr.bf16.mxu0 0
    %1402 = vmatmul.mubr.bf16.gmra.mxu0 %v1356
    %v1403 = vpop.f32.mrf.mxu0
    %v1404 = vadd.f32 0.0, %v1403
    %v1405 = vpop.f32.mrf.mxu0
    %v1406 = vpop.f32.mrf.mxu0
    %v1407 = vadd.f32 0.0, %v1406
    %v1408 = vpop.f32.mrf.mxu0
    %1409 = vdwg.mxu0
    %v1410 = vadd.f32 %v1344, %v1396
    %v1411 = vadd.f32 %v1345, %v1399
    %v1412 = vadd.f32 %v1346, %v1404
    %v1413 = vadd.f32 %v1347, %v1407
    %v1414 = vld [vmem:[%s4] sm:$0x1]
    %v1416 = vlaneseq
    %v1417 = vshrl.u32 %v1416, 7
    %v1418 = vsub.s32 0, %v1417
    %v1419 = vrot.slane %v1414, %v1418
    %v1421 = vadd.f32 %v1410, %v1419
    %v1422 = vadd.f32 %v1411, %v1419
    %v1423 = vadd.f32 %v1412, %v1419
    %v1424 = vadd.f32 %v1413, %v1419
    %1425 = vst.msk [vmem:[#allocation8] sm:$0xff] %vm92, %v1421
    %1426 = vst.msk [vmem:[#allocation8 + $0x8] sm:$0xff] %vm92, %v1422
    %1427 = vst.msk [vmem:[#allocation8 + $0x10] sm:$0xff] %vm92, %v1423
    %1428 = vst.msk [vmem:[#allocation8 + $0x18] sm:$0xff] %vm92, %v1424
    // Predicated region
    $region34: #{tpu_custom_call.1} parent=1 // pred_check
      _
    $region35: #{tpu_custom_call.1} parent=1 // pred_check_branch
      %1430 = sbr.rel (0) target = $region37
    $region36: #{tpu_custom_call.1} parent=1 // pred_region
      %s1432 = ssub.s32 512, 512
      %1433 = vsyncadd [#allocation4], %s1432
      %s1434 = sshll.u32 [#allocation8], 4
      %s1435 = int_to_ptr.vmem [resolvable:$true] %s1434
      %1440 = dma.vmem_to_hbm [thread:$0]  %s1435, 512, %s5, [#allocation4], 128, 128, 8
    $region37: #{tpu_custom_call.1} parent=1 // pred_fallthru
      _
    // Predicated region
    $region38: #{tpu_custom_call.1} parent=1 // pred_check
      _
    $region39: #{tpu_custom_call.1} parent=1 // pred_check_branch
      %1442 = sbr.rel (0) target = $region41
    $region40: #{tpu_custom_call.1} parent=1 // pred_region
      %1443 = dma.done [#allocation4], 512
    $region41: #{tpu_custom_call.1} parent=1 // pred_fallthru
      _
    %1444 = vsyncpa [#allocation3], 1
    %1445 = vsyncpa [#allocation6], 1
    %1446 = vsyncpa [#allocation4], 1

</llo_original>
